<compile_context>
chip_gen: v7x
topology: tpu7x:2x2x1
jax: 0.10.0
libtpu: 0.0.40
codegen_flags: <defaults>
</compile_context>

<pallas_src>
import functools

import jax
import jax.numpy as jnp
from jax import lax
from jax.experimental import pallas as pl
from jax.experimental.pallas import tpu as pltpu

NUM_HEADS = 8


def _cross_attn_kernel(q_ref, kv_ref, wq_ref, wkv_ref, wo_ref, bo_ref, o_ref,
                       *, num_heads, batch_block, lq, lkv, matmul_dtype):
    dq = wq_ref.shape[1]
    head_dim = dq // num_heads
    bb = batch_block

    def mm(x):  # optional MXU-operand cast (bf16 recommended on v5e/v6e/v7x)
        return x if matmul_dtype is None else x.astype(matmul_dtype)

    # --- projections: one big-M MXU matmul each (K/V fused, N = 2*Dq) -------
    qp = jnp.dot(mm(q_ref[...]), mm(wq_ref[...]),
                 preferred_element_type=jnp.float32)            # (bb*Lq,  Dq)
    kvp = jnp.dot(mm(kv_ref[...]), mm(wkv_ref[...]),
                  preferred_element_type=jnp.float32)           # (bb*Lkv, 2Dq)

    # Safe reshapes: split the leading (sublane) dim, last dim untouched.
    qp = qp.reshape(bb, lq, dq)
    kp = kvp[:, :dq].reshape(bb, lkv, dq)
    vp = kvp[:, dq:].reshape(bb, lkv, dq)

    # --- attention, batched over the bb batch elements of this block --------
    heads = []
    for h in range(num_heads):
        s = h * head_dim
        qh = qp[:, :, s:s + head_dim]                           # (bb, Lq,  hd)
        kh = kp[:, :, s:s + head_dim]                           # (bb, Lkv, hd)
        vh = vp[:, :, s:s + head_dim]                           # (bb, Lkv, hd)

        # q @ k^T without materialising k^T; 1/sqrt(hd) already folded in Wq.
        logits = lax.dot_general(
            mm(qh), mm(kh),
            dimension_numbers=(((2,), (2,)), ((0,), (0,))),
            preferred_element_type=jnp.float32)                 # (bb, Lq, Lkv)

        logits = logits - jnp.max(logits, axis=-1, keepdims=True)
        p = jnp.exp(logits)
        p = p * pl.reciprocal(jnp.sum(p, axis=-1, keepdims=True), approx=True)

        heads.append(lax.dot_general(
            mm(p), mm(vh),
            dimension_numbers=(((2,), (1,)), ((0,), (0,))),
            preferred_element_type=jnp.float32))                # (bb, Lq, hd)

    # --- merge heads; ONE full-K output projection + bias + full store ------
    attn = jnp.concatenate(heads, axis=-1).reshape(bb * lq, dq)  # (bb*Lq, Dq)
    out = jnp.dot(mm(attn), mm(wo_ref[...]),
                  preferred_element_type=jnp.float32)
    out = out + bo_ref[...].astype(jnp.float32)                  # (bb*Lq, Dq)
    o_ref[...] = out.astype(o_ref.dtype)


def cross_attention(q, kv, wq, wk, wv, wo, bo, *, batch_block=None,
                    matmul_dtype=None, vmem_limit_bytes=None):
    """q: (B, Lq, Dq)  kv: (B, Lkv, Dkv)  -> (B, Lq, Dq).

    batch_block: batch elements per grid step.  Default targets >=4 grid steps
      (>=2 for tiny B) so DMA/compute pipeline and, on v7x, both TensorCores
      engage.  On v7x (64 MiB VMEM) pick roughly half the v6e block size.
    matmul_dtype: jnp.bfloat16 runs MXU matmuls in bf16 (f32 accumulation /
      f32 softmax) — recommended on v5e, v6e and v7x; None keeps f32 operands.
    vmem_limit_bytes: raise the scoped-VMEM limit for large blocks
      (defaults: 16 MiB on v5e, 32 MiB on v6e/v7x).
    """
    B, Lq, Dq = q.shape
    _, Lkv, Dkv = kv.shape
    assert Dq % NUM_HEADS == 0

    if batch_block is None:
        batch_block = max(1, B // 4)
        while B % batch_block:
            batch_block -= 1
    assert B % batch_block == 0
    grid_b = B // batch_block

    head_dim = Dq // NUM_HEADS
    scale = float(head_dim) ** -0.5
    wq_scaled = (wq * scale).astype(wq.dtype)     # fold softmax scale into Wq
    w_kv = jnp.concatenate([wk, wv], axis=1)      # fused K/V weight (Dkv, 2Dq)
    bo2d = bo.reshape(1, Dq)

    # Collapse (batch_block, L) into one big-M matmul dimension per grid step.
    q3 = q.reshape(grid_b, batch_block * Lq, Dq)
    kv3 = kv.reshape(grid_b, batch_block * Lkv, Dkv)

    kernel = functools.partial(
        _cross_attn_kernel, num_heads=NUM_HEADS, batch_block=batch_block,
        lq=Lq, lkv=Lkv, matmul_dtype=matmul_dtype)

    out = pl.pallas_call(
        kernel,
        out_shape=jax.ShapeDtypeStruct((grid_b, batch_block * Lq, Dq), q.dtype),
        grid_spec=pltpu.PrefetchScalarGridSpec(
            num_scalar_prefetch=0,
            grid=(grid_b,),
            in_specs=[
                pl.BlockSpec((None, batch_block * Lq, Dq),
                             lambda b: (b, 0, 0)),                   # q
                pl.BlockSpec((None, batch_block * Lkv, Dkv),
                             lambda b: (b, 0, 0)),                   # kv
                pl.BlockSpec((Dq, Dq), lambda b: (0, 0)),            # Wq (pre-scaled)
                pl.BlockSpec((Dkv, 2 * Dq), lambda b: (0, 0)),       # [Wk | Wv]
                pl.BlockSpec((Dq, Dq), lambda b: (0, 0)),            # Wout
                pl.BlockSpec((1, Dq), lambda b: (0, 0)),             # bout
            ],
            out_specs=pl.BlockSpec((None, batch_block * Lq, Dq),
                                   lambda b: (b, 0, 0)),
        ),
        compiler_params=pltpu.CompilerParams(
            dimension_semantics=("parallel",),
            vmem_limit_bytes=vmem_limit_bytes),
    )(q3, kv3, wq_scaled, w_kv, wo, bo2d)

    return out.reshape(B, Lq, Dq)


def _reference(q, kv, wq, wk, wv, wo, bo):
    """Plain-JAX replica of the PyTorch forward (for verification)."""
    B, Lq, Dq = q.shape
    hd = Dq // NUM_HEADS
    qp = q @ wq
    kp = kv @ wk
    vp = kv @ wv

    def split(x):
        b, l, d = x.shape
        return x.reshape(b, l, NUM_HEADS, d // NUM_HEADS).transpose(0, 2, 1, 3)

    qh, kh, vh = split(qp), split(kp), split(vp)              # (B, H, L, hd)
    logits = (hd ** -0.5) * jnp.einsum('bhqd,bhkd->bhqk', qh, kh)
    p = jax.nn.softmax(logits, axis=-1)
    a = jnp.einsum('bhqk,bhkd->bhqd', p, vh)                  # (B, H, Lq, hd)
    a = a.transpose(0, 2, 1, 3).reshape(B, Lq, Dq)
    return a @ wo + bo


if __name__ == "__main__":
    B, Lq, Lkv = 2, 8, 16
    dim_q, dim_kv = 32, 48          # 8 heads, head_dim = 4

    key = jax.random.PRNGKey(0)
    kq, kkv, k1, k2, k3, k4, k5 = jax.random.split(key, 7)

    q = jax.random.normal(kq, (B, Lq, dim_q), dtype=jnp.float32)
    kv = jax.random.normal(kkv, (B, Lkv, dim_kv), dtype=jnp.float32)

    # Deterministic synthetic parameters (shapes from nn.Linear in __init__),
    # stored as (in_features, out_features).
    wq = jax.random.normal(k1, (dim_q, dim_q), dtype=jnp.float32) * 0.1
    wk = jax.random.normal(k2, (dim_kv, dim_q), dtype=jnp.float32) * 0.1
    wv = jax.random.normal(k3, (dim_kv, dim_q), dtype=jnp.float32) * 0.1
    wo = jax.random.normal(k4, (dim_q, dim_q), dtype=jnp.float32) * 0.1
    bo = jax.random.normal(k5, (dim_q,), dtype=jnp.float32) * 0.1

    ref = _reference(q, kv, wq, wk, wv, wo, bo)

    # f32 MXU path (exact apart from the EUP approximate reciprocal).
    out = cross_attention(q, kv, wq, wk, wv, wo, bo)
    out = jax.block_until_ready(out)
    assert out.shape == (B, Lq, dim_q)
    assert jnp.allclose(out, ref, atol=2e-3, rtol=2e-3), "mismatch vs reference"

    # bf16 MXU path (recommended default on real workloads; f32 accumulation
    # and f32 softmax).  Looser tolerance: bf16 operand rounding is expected.
    out_bf16 = cross_attention(q, kv, wq, wk, wv, wo, bo,
                               matmul_dtype=jnp.bfloat16)
    out_bf16 = jax.block_until_ready(out_bf16)
    assert jnp.allclose(out_bf16, ref, atol=1e-1, rtol=1e-1), "bf16 mismatch"

    print("KERNEL_OK")
</pallas_src>

<mosaic_0001>
module attributes {stable_mosaic.version = 11 : i64} {
  func.func @_cross_attn_kernel(%arg0: i32, %arg1: memref<1x8x32xf32, #tpu.memory_space<vmem>>, %arg2: memref<1x16x48xf32, #tpu.memory_space<vmem>>, %arg3: memref<32x32xf32, #tpu.memory_space<vmem>>, %arg4: memref<48x64xf32, #tpu.memory_space<vmem>>, %arg5: memref<32x32xf32, #tpu.memory_space<vmem>>, %arg6: memref<1x32xf32, #tpu.memory_space<vmem>>, %arg7: memref<1x8x32xf32, #tpu.memory_space<vmem>>) attributes {dimension_semantics = [#tpu.dimension_semantics<parallel>], iteration_bounds = array<i64: 2>, scalar_prefetch = 0 : i64, scratch_operands = 0 : i64, tpu.core_type = #tpu.core_type<tc>, window_params = [{transform_indices = @transform_0, window_bounds = array<i64: 1, 8, 32>}, {transform_indices = @transform_1, window_bounds = array<i64: 1, 16, 48>}, {pipeline_mode = #tpu.pipeline_mode<synchronous>, transform_indices = @transform_2, window_bounds = array<i64: 32, 32>}, {pipeline_mode = #tpu.pipeline_mode<synchronous>, transform_indices = @transform_3, window_bounds = array<i64: 48, 64>}, {pipeline_mode = #tpu.pipeline_mode<synchronous>, transform_indices = @transform_4, window_bounds = array<i64: 32, 32>}, {pipeline_mode = #tpu.pipeline_mode<synchronous>, transform_indices = @transform_5, window_bounds = array<i64: 1, 32>}, {transform_indices = @transform_6, window_bounds = array<i64: 1, 8, 32>}]} {
    %c0 = arith.constant 0 : index
    %c0_0 = arith.constant 0 : index
    %c0_1 = arith.constant 0 : index
    %0 = vector.load %arg1[%c0, %c0_0, %c0_1] : memref<1x8x32xf32, #tpu.memory_space<vmem>>, vector<1x8x32xf32>
    %1 = vector.shape_cast %0 : vector<1x8x32xf32> to vector<8x32xf32>
    %c0_2 = arith.constant 0 : index
    %c0_3 = arith.constant 0 : index
    %2 = vector.load %arg3[%c0_2, %c0_3] : memref<32x32xf32, #tpu.memory_space<vmem>>, vector<32x32xf32>
    %cst = arith.constant dense<0.000000e+00> : vector<8x32xf32>
    %3 = tpu.matmul %1, %2, %cst {dimension_numbers = #tpu.dot_dimension_numbers<[1], [0], [0], [1], [0, 0, 1, 1], [], []>} : vector<8x32xf32>, vector<32x32xf32>, vector<8x32xf32> -> vector<8x32xf32>
    %c0_4 = arith.constant 0 : index
    %c0_5 = arith.constant 0 : index
    %c0_6 = arith.constant 0 : index
    %4 = vector.load %arg2[%c0_4, %c0_5, %c0_6] : memref<1x16x48xf32, #tpu.memory_space<vmem>>, vector<1x16x48xf32>
    %5 = vector.shape_cast %4 : vector<1x16x48xf32> to vector<16x48xf32>
    %c0_7 = arith.constant 0 : index
    %c0_8 = arith.constant 0 : index
    %6 = vector.load %arg4[%c0_7, %c0_8] : memref<48x64xf32, #tpu.memory_space<vmem>>, vector<48x64xf32>
    %cst_9 = arith.constant dense<0.000000e+00> : vector<16x64xf32>
    %7 = tpu.matmul %5, %6, %cst_9 {dimension_numbers = #tpu.dot_dimension_numbers<[1], [0], [0], [1], [0, 0, 1, 1], [], []>} : vector<16x48xf32>, vector<48x64xf32>, vector<16x64xf32> -> vector<16x64xf32>
    %8 = vector.shape_cast %3 : vector<8x32xf32> to vector<1x8x32xf32>
    %9 = vector.extract_strided_slice %7 {offsets = [0, 0], sizes = [16, 32], strides = [1, 1]} : vector<16x64xf32> to vector<16x32xf32>
    %10 = vector.shape_cast %9 : vector<16x32xf32> to vector<1x16x32xf32>
    %11 = vector.extract_strided_slice %7 {offsets = [0, 32], sizes = [16, 32], strides = [1, 1]} : vector<16x64xf32> to vector<16x32xf32>
    %12 = vector.shape_cast %11 : vector<16x32xf32> to vector<1x16x32xf32>
    %13 = vector.extract_strided_slice %8 {offsets = [0, 0, 0], sizes = [1, 8, 4], strides = [1, 1, 1]} : vector<1x8x32xf32> to vector<1x8x4xf32>
    %14 = vector.extract_strided_slice %10 {offsets = [0, 0, 0], sizes = [1, 16, 4], strides = [1, 1, 1]} : vector<1x16x32xf32> to vector<1x16x4xf32>
    %15 = vector.extract_strided_slice %12 {offsets = [0, 0, 0], sizes = [1, 16, 4], strides = [1, 1, 1]} : vector<1x16x32xf32> to vector<1x16x4xf32>
    %cst_10 = arith.constant dense<0.000000e+00> : vector<1x8x16xf32>
    %16 = tpu.matmul %13, %14, %cst_10 {dimension_numbers = #tpu.dot_dimension_numbers<[2], [2], [1], [1], [0, 0, 0, 1, 1, 1], [0], [0]>} : vector<1x8x4xf32>, vector<1x16x4xf32>, vector<1x8x16xf32> -> vector<1x8x16xf32>
    %cst_11 = arith.constant dense<0xFF800000> : vector<1x8xf32>
    %17 = vector.multi_reduction <maximumf>, %16, %cst_11 [2] : vector<1x8x16xf32> to vector<1x8xf32>
    %18 = vector.shape_cast %17 : vector<1x8xf32> to vector<1x8x1xf32>
    %19 = vector.broadcast %18 : vector<1x8x1xf32> to vector<1x8x16xf32>
    %20 = arith.subf %16, %19 : vector<1x8x16xf32>
    %21 = math.exp %20 : vector<1x8x16xf32>
    %cst_12 = arith.constant dense<0.000000e+00> : vector<1x8xf32>
    %22 = vector.multi_reduction <add>, %21, %cst_12 [2] : vector<1x8x16xf32> to vector<1x8xf32>
    %23 = vector.shape_cast %22 : vector<1x8xf32> to vector<1x8x1xf32>
    %24 = tpu.reciprocal %23 {approx = true} : vector<1x8x1xf32> -> vector<1x8x1xf32>
    %25 = vector.broadcast %24 : vector<1x8x1xf32> to vector<1x8x16xf32>
    %26 = arith.mulf %21, %25 : vector<1x8x16xf32>
    %cst_13 = arith.constant dense<0.000000e+00> : vector<1x8x4xf32>
    %27 = tpu.matmul %26, %15, %cst_13 {dimension_numbers = #tpu.dot_dimension_numbers<[2], [1], [1], [2], [0, 0, 0, 1, 1, 2], [0], [0]>} : vector<1x8x16xf32>, vector<1x16x4xf32>, vector<1x8x4xf32> -> vector<1x8x4xf32>
    %28 = vector.extract_strided_slice %8 {offsets = [0, 0, 4], sizes = [1, 8, 4], strides = [1, 1, 1]} : vector<1x8x32xf32> to vector<1x8x4xf32>
    %29 = vector.extract_strided_slice %10 {offsets = [0, 0, 4], sizes = [1, 16, 4], strides = [1, 1, 1]} : vector<1x16x32xf32> to vector<1x16x4xf32>
    %30 = vector.extract_strided_slice %12 {offsets = [0, 0, 4], sizes = [1, 16, 4], strides = [1, 1, 1]} : vector<1x16x32xf32> to vector<1x16x4xf32>
    %cst_14 = arith.constant dense<0.000000e+00> : vector<1x8x16xf32>
    %31 = tpu.matmul %28, %29, %cst_14 {dimension_numbers = #tpu.dot_dimension_numbers<[2], [2], [1], [1], [0, 0, 0, 1, 1, 1], [0], [0]>} : vector<1x8x4xf32>, vector<1x16x4xf32>, vector<1x8x16xf32> -> vector<1x8x16xf32>
    %cst_15 = arith.constant dense<0xFF800000> : vector<1x8xf32>
    %32 = vector.multi_reduction <maximumf>, %31, %cst_15 [2] : vector<1x8x16xf32> to vector<1x8xf32>
    %33 = vector.shape_cast %32 : vector<1x8xf32> to vector<1x8x1xf32>
    %34 = vector.broadcast %33 : vector<1x8x1xf32> to vector<1x8x16xf32>
    %35 = arith.subf %31, %34 : vector<1x8x16xf32>
    %36 = math.exp %35 : vector<1x8x16xf32>
    %cst_16 = arith.constant dense<0.000000e+00> : vector<1x8xf32>
    %37 = vector.multi_reduction <add>, %36, %cst_16 [2] : vector<1x8x16xf32> to vector<1x8xf32>
    %38 = vector.shape_cast %37 : vector<1x8xf32> to vector<1x8x1xf32>
    %39 = tpu.reciprocal %38 {approx = true} : vector<1x8x1xf32> -> vector<1x8x1xf32>
    %40 = vector.broadcast %39 : vector<1x8x1xf32> to vector<1x8x16xf32>
    %41 = arith.mulf %36, %40 : vector<1x8x16xf32>
    %cst_17 = arith.constant dense<0.000000e+00> : vector<1x8x4xf32>
    %42 = tpu.matmul %41, %30, %cst_17 {dimension_numbers = #tpu.dot_dimension_numbers<[2], [1], [1], [2], [0, 0, 0, 1, 1, 2], [0], [0]>} : vector<1x8x16xf32>, vector<1x16x4xf32>, vector<1x8x4xf32> -> vector<1x8x4xf32>
    %43 = vector.extract_strided_slice %8 {offsets = [0, 0, 8], sizes = [1, 8, 4], strides = [1, 1, 1]} : vector<1x8x32xf32> to vector<1x8x4xf32>
    %44 = vector.extract_strided_slice %10 {offsets = [0, 0, 8], sizes = [1, 16, 4], strides = [1, 1, 1]} : vector<1x16x32xf32> to vector<1x16x4xf32>
    %45 = vector.extract_strided_slice %12 {offsets = [0, 0, 8], sizes = [1, 16, 4], strides = [1, 1, 1]} : vector<1x16x32xf32> to vector<1x16x4xf32>
    %cst_18 = arith.constant dense<0.000000e+00> : vector<1x8x16xf32>
    %46 = tpu.matmul %43, %44, %cst_18 {dimension_numbers = #tpu.dot_dimension_numbers<[2], [2], [1], [1], [0, 0, 0, 1, 1, 1], [0], [0]>} : vector<1x8x4xf32>, vector<1x16x4xf32>, vector<1x8x16xf32> -> vector<1x8x16xf32>
    %cst_19 = arith.constant dense<0xFF800000> : vector<1x8xf32>
    %47 = vector.multi_reduction <maximumf>, %46, %cst_19 [2] : vector<1x8x16xf32> to vector<1x8xf32>
    %48 = vector.shape_cast %47 : vector<1x8xf32> to vector<1x8x1xf32>
    %49 = vector.broadcast %48 : vector<1x8x1xf32> to vector<1x8x16xf32>
    %50 = arith.subf %46, %49 : vector<1x8x16xf32>
    %51 = math.exp %50 : vector<1x8x16xf32>
    %cst_20 = arith.constant dense<0.000000e+00> : vector<1x8xf32>
    %52 = vector.multi_reduction <add>, %51, %cst_20 [2] : vector<1x8x16xf32> to vector<1x8xf32>
    %53 = vector.shape_cast %52 : vector<1x8xf32> to vector<1x8x1xf32>
    %54 = tpu.reciprocal %53 {approx = true} : vector<1x8x1xf32> -> vector<1x8x1xf32>
    %55 = vector.broadcast %54 : vector<1x8x1xf32> to vector<1x8x16xf32>
    %56 = arith.mulf %51, %55 : vector<1x8x16xf32>
    %cst_21 = arith.constant dense<0.000000e+00> : vector<1x8x4xf32>
    %57 = tpu.matmul %56, %45, %cst_21 {dimension_numbers = #tpu.dot_dimension_numbers<[2], [1], [1], [2], [0, 0, 0, 1, 1, 2], [0], [0]>} : vector<1x8x16xf32>, vector<1x16x4xf32>, vector<1x8x4xf32> -> vector<1x8x4xf32>
    %58 = vector.extract_strided_slice %8 {offsets = [0, 0, 12], sizes = [1, 8, 4], strides = [1, 1, 1]} : vector<1x8x32xf32> to vector<1x8x4xf32>
    %59 = vector.extract_strided_slice %10 {offsets = [0, 0, 12], sizes = [1, 16, 4], strides = [1, 1, 1]} : vector<1x16x32xf32> to vector<1x16x4xf32>
    %60 = vector.extract_strided_slice %12 {offsets = [0, 0, 12], sizes = [1, 16, 4], strides = [1, 1, 1]} : vector<1x16x32xf32> to vector<1x16x4xf32>
    %cst_22 = arith.constant dense<0.000000e+00> : vector<1x8x16xf32>
    %61 = tpu.matmul %58, %59, %cst_22 {dimension_numbers = #tpu.dot_dimension_numbers<[2], [2], [1], [1], [0, 0, 0, 1, 1, 1], [0], [0]>} : vector<1x8x4xf32>, vector<1x16x4xf32>, vector<1x8x16xf32> -> vector<1x8x16xf32>
    %cst_23 = arith.constant dense<0xFF800000> : vector<1x8xf32>
    %62 = vector.multi_reduction <maximumf>, %61, %cst_23 [2] : vector<1x8x16xf32> to vector<1x8xf32>
    %63 = vector.shape_cast %62 : vector<1x8xf32> to vector<1x8x1xf32>
    %64 = vector.broadcast %63 : vector<1x8x1xf32> to vector<1x8x16xf32>
    %65 = arith.subf %61, %64 : vector<1x8x16xf32>
    %66 = math.exp %65 : vector<1x8x16xf32>
    %cst_24 = arith.constant dense<0.000000e+00> : vector<1x8xf32>
    %67 = vector.multi_reduction <add>, %66, %cst_24 [2] : vector<1x8x16xf32> to vector<1x8xf32>
    %68 = vector.shape_cast %67 : vector<1x8xf32> to vector<1x8x1xf32>
    %69 = tpu.reciprocal %68 {approx = true} : vector<1x8x1xf32> -> vector<1x8x1xf32>
    %70 = vector.broadcast %69 : vector<1x8x1xf32> to vector<1x8x16xf32>
    %71 = arith.mulf %66, %70 : vector<1x8x16xf32>
    %cst_25 = arith.constant dense<0.000000e+00> : vector<1x8x4xf32>
    %72 = tpu.matmul %71, %60, %cst_25 {dimension_numbers = #tpu.dot_dimension_numbers<[2], [1], [1], [2], [0, 0, 0, 1, 1, 2], [0], [0]>} : vector<1x8x16xf32>, vector<1x16x4xf32>, vector<1x8x4xf32> -> vector<1x8x4xf32>
    %73 = vector.extract_strided_slice %8 {offsets = [0, 0, 16], sizes = [1, 8, 4], strides = [1, 1, 1]} : vector<1x8x32xf32> to vector<1x8x4xf32>
    %74 = vector.extract_strided_slice %10 {offsets = [0, 0, 16], sizes = [1, 16, 4], strides = [1, 1, 1]} : vector<1x16x32xf32> to vector<1x16x4xf32>
    %75 = vector.extract_strided_slice %12 {offsets = [0, 0, 16], sizes = [1, 16, 4], strides = [1, 1, 1]} : vector<1x16x32xf32> to vector<1x16x4xf32>
    %cst_26 = arith.constant dense<0.000000e+00> : vector<1x8x16xf32>
    %76 = tpu.matmul %73, %74, %cst_26 {dimension_numbers = #tpu.dot_dimension_numbers<[2], [2], [1], [1], [0, 0, 0, 1, 1, 1], [0], [0]>} : vector<1x8x4xf32>, vector<1x16x4xf32>, vector<1x8x16xf32> -> vector<1x8x16xf32>
    %cst_27 = arith.constant dense<0xFF800000> : vector<1x8xf32>
    %77 = vector.multi_reduction <maximumf>, %76, %cst_27 [2] : vector<1x8x16xf32> to vector<1x8xf32>
    %78 = vector.shape_cast %77 : vector<1x8xf32> to vector<1x8x1xf32>
    %79 = vector.broadcast %78 : vector<1x8x1xf32> to vector<1x8x16xf32>
    %80 = arith.subf %76, %79 : vector<1x8x16xf32>
    %81 = math.exp %80 : vector<1x8x16xf32>
    %cst_28 = arith.constant dense<0.000000e+00> : vector<1x8xf32>
    %82 = vector.multi_reduction <add>, %81, %cst_28 [2] : vector<1x8x16xf32> to vector<1x8xf32>
    %83 = vector.shape_cast %82 : vector<1x8xf32> to vector<1x8x1xf32>
    %84 = tpu.reciprocal %83 {approx = true} : vector<1x8x1xf32> -> vector<1x8x1xf32>
    %85 = vector.broadcast %84 : vector<1x8x1xf32> to vector<1x8x16xf32>
    %86 = arith.mulf %81, %85 : vector<1x8x16xf32>
    %cst_29 = arith.constant dense<0.000000e+00> : vector<1x8x4xf32>
    %87 = tpu.matmul %86, %75, %cst_29 {dimension_numbers = #tpu.dot_dimension_numbers<[2], [1], [1], [2], [0, 0, 0, 1, 1, 2], [0], [0]>} : vector<1x8x16xf32>, vector<1x16x4xf32>, vector<1x8x4xf32> -> vector<1x8x4xf32>
    %88 = vector.extract_strided_slice %8 {offsets = [0, 0, 20], sizes = [1, 8, 4], strides = [1, 1, 1]} : vector<1x8x32xf32> to vector<1x8x4xf32>
    %89 = vector.extract_strided_slice %10 {offsets = [0, 0, 20], sizes = [1, 16, 4], strides = [1, 1, 1]} : vector<1x16x32xf32> to vector<1x16x4xf32>
    %90 = vector.extract_strided_slice %12 {offsets = [0, 0, 20], sizes = [1, 16, 4], strides = [1, 1, 1]} : vector<1x16x32xf32> to vector<1x16x4xf32>
    %cst_30 = arith.constant dense<0.000000e+00> : vector<1x8x16xf32>
    %91 = tpu.matmul %88, %89, %cst_30 {dimension_numbers = #tpu.dot_dimension_numbers<[2], [2], [1], [1], [0, 0, 0, 1, 1, 1], [0], [0]>} : vector<1x8x4xf32>, vector<1x16x4xf32>, vector<1x8x16xf32> -> vector<1x8x16xf32>
    %cst_31 = arith.constant dense<0xFF800000> : vector<1x8xf32>
    %92 = vector.multi_reduction <maximumf>, %91, %cst_31 [2] : vector<1x8x16xf32> to vector<1x8xf32>
    %93 = vector.shape_cast %92 : vector<1x8xf32> to vector<1x8x1xf32>
    %94 = vector.broadcast %93 : vector<1x8x1xf32> to vector<1x8x16xf32>
    %95 = arith.subf %91, %94 : vector<1x8x16xf32>
    %96 = math.exp %95 : vector<1x8x16xf32>
    %cst_32 = arith.constant dense<0.000000e+00> : vector<1x8xf32>
    %97 = vector.multi_reduction <add>, %96, %cst_32 [2] : vector<1x8x16xf32> to vector<1x8xf32>
    %98 = vector.shape_cast %97 : vector<1x8xf32> to vector<1x8x1xf32>
    %99 = tpu.reciprocal %98 {approx = true} : vector<1x8x1xf32> -> vector<1x8x1xf32>
    %100 = vector.broadcast %99 : vector<1x8x1xf32> to vector<1x8x16xf32>
    %101 = arith.mulf %96, %100 : vector<1x8x16xf32>
    %cst_33 = arith.constant dense<0.000000e+00> : vector<1x8x4xf32>
    %102 = tpu.matmul %101, %90, %cst_33 {dimension_numbers = #tpu.dot_dimension_numbers<[2], [1], [1], [2], [0, 0, 0, 1, 1, 2], [0], [0]>} : vector<1x8x16xf32>, vector<1x16x4xf32>, vector<1x8x4xf32> -> vector<1x8x4xf32>
    %103 = vector.extract_strided_slice %8 {offsets = [0, 0, 24], sizes = [1, 8, 4], strides = [1, 1, 1]} : vector<1x8x32xf32> to vector<1x8x4xf32>
    %104 = vector.extract_strided_slice %10 {offsets = [0, 0, 24], sizes = [1, 16, 4], strides = [1, 1, 1]} : vector<1x16x32xf32> to vector<1x16x4xf32>
    %105 = vector.extract_strided_slice %12 {offsets = [0, 0, 24], sizes = [1, 16, 4], strides = [1, 1, 1]} : vector<1x16x32xf32> to vector<1x16x4xf32>
    %cst_34 = arith.constant dense<0.000000e+00> : vector<1x8x16xf32>
    %106 = tpu.matmul %103, %104, %cst_34 {dimension_numbers = #tpu.dot_dimension_numbers<[2], [2], [1], [1], [0, 0, 0, 1, 1, 1], [0], [0]>} : vector<1x8x4xf32>, vector<1x16x4xf32>, vector<1x8x16xf32> -> vector<1x8x16xf32>
    %cst_35 = arith.constant dense<0xFF800000> : vector<1x8xf32>
    %107 = vector.multi_reduction <maximumf>, %106, %cst_35 [2] : vector<1x8x16xf32> to vector<1x8xf32>
    %108 = vector.shape_cast %107 : vector<1x8xf32> to vector<1x8x1xf32>
    %109 = vector.broadcast %108 : vector<1x8x1xf32> to vector<1x8x16xf32>
    %110 = arith.subf %106, %109 : vector<1x8x16xf32>
    %111 = math.exp %110 : vector<1x8x16xf32>
    %cst_36 = arith.constant dense<0.000000e+00> : vector<1x8xf32>
    %112 = vector.multi_reduction <add>, %111, %cst_36 [2] : vector<1x8x16xf32> to vector<1x8xf32>
    %113 = vector.shape_cast %112 : vector<1x8xf32> to vector<1x8x1xf32>
    %114 = tpu.reciprocal %113 {approx = true} : vector<1x8x1xf32> -> vector<1x8x1xf32>
    %115 = vector.broadcast %114 : vector<1x8x1xf32> to vector<1x8x16xf32>
    %116 = arith.mulf %111, %115 : vector<1x8x16xf32>
    %cst_37 = arith.constant dense<0.000000e+00> : vector<1x8x4xf32>
    %117 = tpu.matmul %116, %105, %cst_37 {dimension_numbers = #tpu.dot_dimension_numbers<[2], [1], [1], [2], [0, 0, 0, 1, 1, 2], [0], [0]>} : vector<1x8x16xf32>, vector<1x16x4xf32>, vector<1x8x4xf32> -> vector<1x8x4xf32>
    %118 = vector.extract_strided_slice %8 {offsets = [0, 0, 28], sizes = [1, 8, 4], strides = [1, 1, 1]} : vector<1x8x32xf32> to vector<1x8x4xf32>
    %119 = vector.extract_strided_slice %10 {offsets = [0, 0, 28], sizes = [1, 16, 4], strides = [1, 1, 1]} : vector<1x16x32xf32> to vector<1x16x4xf32>
    %120 = vector.extract_strided_slice %12 {offsets = [0, 0, 28], sizes = [1, 16, 4], strides = [1, 1, 1]} : vector<1x16x32xf32> to vector<1x16x4xf32>
    %cst_38 = arith.constant dense<0.000000e+00> : vector<1x8x16xf32>
    %121 = tpu.matmul %118, %119, %cst_38 {dimension_numbers = #tpu.dot_dimension_numbers<[2], [2], [1], [1], [0, 0, 0, 1, 1, 1], [0], [0]>} : vector<1x8x4xf32>, vector<1x16x4xf32>, vector<1x8x16xf32> -> vector<1x8x16xf32>
    %cst_39 = arith.constant dense<0xFF800000> : vector<1x8xf32>
    %122 = vector.multi_reduction <maximumf>, %121, %cst_39 [2] : vector<1x8x16xf32> to vector<1x8xf32>
    %123 = vector.shape_cast %122 : vector<1x8xf32> to vector<1x8x1xf32>
    %124 = vector.broadcast %123 : vector<1x8x1xf32> to vector<1x8x16xf32>
    %125 = arith.subf %121, %124 : vector<1x8x16xf32>
    %126 = math.exp %125 : vector<1x8x16xf32>
    %cst_40 = arith.constant dense<0.000000e+00> : vector<1x8xf32>
    %127 = vector.multi_reduction <add>, %126, %cst_40 [2] : vector<1x8x16xf32> to vector<1x8xf32>
    %128 = vector.shape_cast %127 : vector<1x8xf32> to vector<1x8x1xf32>
    %129 = tpu.reciprocal %128 {approx = true} : vector<1x8x1xf32> -> vector<1x8x1xf32>
    %130 = vector.broadcast %129 : vector<1x8x1xf32> to vector<1x8x16xf32>
    %131 = arith.mulf %126, %130 : vector<1x8x16xf32>
    %cst_41 = arith.constant dense<0.000000e+00> : vector<1x8x4xf32>
    %132 = tpu.matmul %131, %120, %cst_41 {dimension_numbers = #tpu.dot_dimension_numbers<[2], [1], [1], [2], [0, 0, 0, 1, 1, 2], [0], [0]>} : vector<1x8x16xf32>, vector<1x16x4xf32>, vector<1x8x4xf32> -> vector<1x8x4xf32>
    %133 = tpu.concatenate %27, %42, %57, %72, %87, %102, %117, %132 in 2 : vector<1x8x4xf32>, vector<1x8x4xf32>, vector<1x8x4xf32>, vector<1x8x4xf32>, vector<1x8x4xf32>, vector<1x8x4xf32>, vector<1x8x4xf32>, vector<1x8x4xf32> -> vector<1x8x32xf32>
    %134 = vector.shape_cast %133 : vector<1x8x32xf32> to vector<8x32xf32>
    %c0_42 = arith.constant 0 : index
    %c0_43 = arith.constant 0 : index
    %135 = vector.load %arg5[%c0_42, %c0_43] : memref<32x32xf32, #tpu.memory_space<vmem>>, vector<32x32xf32>
    %cst_44 = arith.constant dense<0.000000e+00> : vector<8x32xf32>
    %136 = tpu.matmul %134, %135, %cst_44 {dimension_numbers = #tpu.dot_dimension_numbers<[1], [0], [0], [1], [0, 0, 1, 1], [], []>} : vector<8x32xf32>, vector<32x32xf32>, vector<8x32xf32> -> vector<8x32xf32>
    %c0_45 = arith.constant 0 : index
    %c0_46 = arith.constant 0 : index
    %137 = vector.load %arg6[%c0_45, %c0_46] : memref<1x32xf32, #tpu.memory_space<vmem>>, vector<1x32xf32>
    %138 = vector.broadcast %137 : vector<1x32xf32> to vector<8x32xf32>
    %139 = arith.addf %136, %138 : vector<8x32xf32>
    %c0_47 = arith.constant 0 : index
    %c0_48 = arith.constant 0 : index
    %c0_49 = arith.constant 0 : index
    %140 = vector.load %arg7[%c0_47, %c0_48, %c0_49] : memref<1x8x32xf32, #tpu.memory_space<vmem>>, vector<1x8x32xf32>
    %141 = vector.shape_cast %140 : vector<1x8x32xf32> to vector<8x32xf32>
    %142 = vector.shape_cast %139 : vector<8x32xf32> to vector<1x8x32xf32>
    tpu.vector_store %arg7[%c0_47, %c0_48, %c0_49], %142 {strides = array<i32>} : memref<1x8x32xf32, #tpu.memory_space<vmem>>, vector<1x8x32xf32>,
    return
  }
  func.func @transform_0(%arg0: i32) -> (i32, i32, i32) {
    %c0_i32 = arith.constant 0 : i32
    %c0_i32_0 = arith.constant 0 : i32
    %c0_i32_1 = arith.constant 0 : i32
    return %arg0, %c0_i32, %c0_i32_0 : i32, i32, i32
  }
  func.func @transform_1(%arg0: i32) -> (i32, i32, i32) {
    %c0_i32 = arith.constant 0 : i32
    %c0_i32_0 = arith.constant 0 : i32
    %c0_i32_1 = arith.constant 0 : i32
    return %arg0, %c0_i32, %c0_i32_0 : i32, i32, i32
  }
  func.func @transform_2(%arg0: i32) -> (i32, i32) {
    %c0_i32 = arith.constant 0 : i32
    %c0_i32_0 = arith.constant 0 : i32
    %c0_i32_1 = arith.constant 0 : i32
    return %c0_i32, %c0_i32_0 : i32, i32
  }
  func.func @transform_3(%arg0: i32) -> (i32, i32) {
    %c0_i32 = arith.constant 0 : i32
    %c0_i32_0 = arith.constant 0 : i32
    %c0_i32_1 = arith.constant 0 : i32
    return %c0_i32, %c0_i32_0 : i32, i32
  }
  func.func @transform_4(%arg0: i32) -> (i32, i32) {
    %c0_i32 = arith.constant 0 : i32
    %c0_i32_0 = arith.constant 0 : i32
    %c0_i32_1 = arith.constant 0 : i32
    return %c0_i32, %c0_i32_0 : i32, i32
  }
  func.func @transform_5(%arg0: i32) -> (i32, i32) {
    %c0_i32 = arith.constant 0 : i32
    %c0_i32_0 = arith.constant 0 : i32
    %c0_i32_1 = arith.constant 0 : i32
    return %c0_i32, %c0_i32_0 : i32, i32
  }
  func.func @transform_6(%arg0: i32) -> (i32, i32, i32) {
    %c0_i32 = arith.constant 0 : i32
    %c0_i32_0 = arith.constant 0 : i32
    %c0_i32_1 = arith.constant 0 : i32
    return %arg0, %c0_i32, %c0_i32_0 : i32, i32, i32
  }
}

</mosaic_0001>

<llo_original>
// kernel: tpu_custom_call.1
$region0: #{tpu_custom_call.1}
  #allocation0 [shape = 'u32[]', space=smem, size = 0x4, offset = 0x4, fixed_abs, tag = 'smem constant byte address 0x4 - core index']
  #allocation1 [shape = 'u32[144,128]{1,0:T(1,128)}', space=vmem, size = 0x12000, scoped, tag = 'internal scratch']
  %s0 = inlined_call_operand.hbm [shape: f32[2,8,32], index: 0, kind: input, shape index: {}]
  %s1 = inlined_call_operand.hbm [shape: f32[2,16,48], index: 1, kind: input, shape index: {}]
  %s2 = inlined_call_operand.hbm [shape: f32[32,32], index: 2, kind: input, shape index: {}]
  %s3 = inlined_call_operand.hbm [shape: f32[48,64], index: 3, kind: input, shape index: {}]
  %s4 = inlined_call_operand.hbm [shape: f32[32,32], index: 4, kind: input, shape index: {}]
  %s5 = inlined_call_operand.vmem [shape: f32[1,32], index: 5, kind: input, shape index: {}]
  %s6 = inlined_call_operand.hbm [shape: f32[2,8,32], index: 6, kind: output, shape index: {}]
  %s7 = sld [smem:[#allocation0]]
  $region77: #{tpu_custom_call.1} parent=0
    _
  %s9 = ssub.s32 1, %s7
  %s10 = scalar_select 0, %s9, %s7
  $region1: #{tpu_custom_call.1} parent=0
    #allocation2 [shape = 'u8[8192]{0}', space=vmem, size = 0x2000, scoped, tag = 'input window, operand 0']
    #allocation3 [shape = 's32[2]{0}', space=sflag, size = 0x8, scoped, tag = 'scoped memory for tpu_custom_call.1']
    #allocation4 [shape = 's32[2]{0}', space=sflag, size = 0x8, scoped, tag = 'scoped memory for tpu_custom_call.1']
    #allocation5 [shape = 'u8[16384]{0}', space=vmem, size = 0x4000, scoped, tag = 'input window, operand 1']
    #allocation6 [shape = 's32[2]{0}', space=sflag, size = 0x8, scoped, tag = 'scoped memory for tpu_custom_call.1']
    #allocation7 [shape = 'u8[16384]{0}', space=vmem, size = 0x4000, scoped, tag = 'input window, operand 2, single buffered']
    #allocation8 [shape = 'u8[24576]{0}', space=vmem, size = 0x6000, scoped, tag = 'input window, operand 3, single buffered']
    #allocation9 [shape = 's32[1]{0}', space=sflag, size = 0x4, scoped, tag = 'scoped memory for tpu_custom_call.1']
    #allocation10 [shape = 'u8[16384]{0}', space=vmem, size = 0x4000, scoped, tag = 'input window, operand 4, single buffered']
    #allocation11 [shape = 'u8[8192]{0}', space=vmem, size = 0x2000, scoped, tag = 'output window, operand 0']
    %11 = vsyncpa [#allocation3], 0
    %s12 = scalar_lea.sflag [#allocation3], 1
    %13 = vsyncpa %s12, 0
    %14 = vsyncpa [#allocation6], 0
    %s15 = scalar_lea.sflag [#allocation6], 1
    %16 = vsyncpa %s15, 0
    %17 = vsyncpa [#allocation9], 0
    %18 = vsyncpa [#allocation4], 0
    %s19 = scalar_lea.sflag [#allocation4], 1
    %20 = vsyncpa %s19, 0
    loop: start=0, step=1, limit=4
    $region2: #{tpu_custom_call.1} parent=1 // loop_pre_header
      _
    $region3: #{tpu_custom_call.1} parent=1 // loop_header
      %s22 = sphi 0, %s26
      %p23 = scmp.ge.s32.totalorder %s22, 4
      %s32 = sphi 0, %s34
      %s35 = sphi 0, %s32
      %s36 = sphi 0, %s35
      %s52 = sphi 0, %s36
      %s58 = sphi 0, %s60
      %s61 = sphi 0, %s58
      %s62 = sphi 0, %s61
      %s78 = sphi 0, %s62
      %s82 = sphi 0, %s82
      %s84 = sphi 0, %s82
      %s85 = sphi 0, %s84
      %s99 = sphi 0, %s85
      %s103 = sphi 0, %s103
      %s105 = sphi 0, %s103
      %s106 = sphi 0, %s105
      %s120 = sphi 0, %s106
      %s124 = sphi 0, %s124
      %s126 = sphi 0, %s124
      %s127 = sphi 0, %s126
      %s141 = sphi 0, %s127
      %s145 = sphi 0, %s145
      %s147 = sphi 0, %s145
      %s148 = sphi 0, %s147
      %s162 = sphi 0, %s148
      %s168 = sphi 0, %s170
      %s171 = sphi 0, %s168
      %s172 = sphi 0, %s171
      %s188 = sphi 0, %s172
    $region4: #{tpu_custom_call.1} parent=1 // loop_header_branch
      %25 = sbr.rel (%p23) target = $region8
    $region5: #{tpu_custom_call.1} parent=1 // loop_body
      %s27 = ssub.s32 %s22, 1
      %s28 = ssub.s32 %s22, 2
      %s29 = sadd.s32 %s22, 1
      %s30 = ssub.s32 %s22, %s29
      %p31 = scmp.eq.s32.totalorder %s30, 0
      %s33 = sadd.s32 %s32, 1
      %s34 = scalar_select %p31, %s32, %s33
      %p37 = pneg %p31
      %p38 = scmp.eq.s32.totalorder %s22, 1
      %p39 = por %p37, %p38
      %p40 = scmp.ne.s32.totalorder %s32, %s35
      %p41 = scmp.eq.s32.totalorder %s22, 0
      %p42 = por %p40, %p41
      %p43 = scmp.ne.s32.totalorder %s32, %s35
      %p44 = scmp.eq.s32.totalorder %s27, 1
      %p45 = por %p43, %p44
      %p46 = scmp.ne.s32.totalorder %s35, %s36
      %p47 = scmp.eq.s32.totalorder %s27, 0
      %p48 = por %p46, %p47
      %p49 = scmp.ne.s32.totalorder %s35, %s36
      %p50 = scmp.eq.s32.totalorder %s28, 1
      %p51 = por %p49, %p50
      %p53 = scmp.ne.s32.totalorder %s36, %s52
      %p54 = scmp.eq.s32.totalorder %s28, 0
      %p55 = por %p53, %p54
      %s56 = ssub.s32 %s22, %s29
      %p57 = scmp.eq.s32.totalorder %s56, 0
      %s59 = sadd.s32 %s58, 1
      %s60 = scalar_select %p57, %s58, %s59
      %p63 = pneg %p57
      %p64 = scmp.eq.s32.totalorder %s22, 1
      %p65 = por %p63, %p64
      %p66 = scmp.ne.s32.totalorder %s58, %s61
      %p67 = scmp.eq.s32.totalorder %s22, 0
      %p68 = por %p66, %p67
      %p69 = scmp.ne.s32.totalorder %s58, %s61
      %p70 = scmp.eq.s32.totalorder %s27, 1
      %p71 = por %p69, %p70
      %p72 = scmp.ne.s32.totalorder %s61, %s62
      %p73 = scmp.eq.s32.totalorder %s27, 0
      %p74 = por %p72, %p73
      %p75 = scmp.ne.s32.totalorder %s61, %s62
      %p76 = scmp.eq.s32.totalorder %s28, 1
      %p77 = por %p75, %p76
      %p79 = scmp.ne.s32.totalorder %s62, %s78
      %p80 = scmp.eq.s32.totalorder %s28, 0
      %p81 = por %p79, %p80
      %s83 = sadd.s32 %s82, 1
      %p86 = scmp.eq.s32.totalorder %s22, 1
      %p87 = scmp.ne.s32.totalorder %s82, %s84
      %p88 = scmp.eq.s32.totalorder %s22, 0
      %p89 = por %p87, %p88
      %p90 = scmp.ne.s32.totalorder %s82, %s84
      %p91 = scmp.eq.s32.totalorder %s27, 1
      %p92 = por %p90, %p91
      %p93 = scmp.ne.s32.totalorder %s84, %s85
      %p94 = scmp.eq.s32.totalorder %s27, 0
      %p95 = por %p93, %p94
      %p96 = scmp.ne.s32.totalorder %s84, %s85
      %p97 = scmp.eq.s32.totalorder %s28, 1
      %p98 = por %p96, %p97
      %p100 = scmp.ne.s32.totalorder %s85, %s99
      %p101 = scmp.eq.s32.totalorder %s28, 0
      %p102 = por %p100, %p101
      %s104 = sadd.s32 %s103, 1
      %p107 = scmp.eq.s32.totalorder %s22, 1
      %p108 = scmp.ne.s32.totalorder %s103, %s105
      %p109 = scmp.eq.s32.totalorder %s22, 0
      %p110 = por %p108, %p109
      %p111 = scmp.ne.s32.totalorder %s103, %s105
      %p112 = scmp.eq.s32.totalorder %s27, 1
      %p113 = por %p111, %p112
      %p114 = scmp.ne.s32.totalorder %s105, %s106
      %p115 = scmp.eq.s32.totalorder %s27, 0
      %p116 = por %p114, %p115
      %p117 = scmp.ne.s32.totalorder %s105, %s106
      %p118 = scmp.eq.s32.totalorder %s28, 1
      %p119 = por %p117, %p118
      %p121 = scmp.ne.s32.totalorder %s106, %s120
      %p122 = scmp.eq.s32.totalorder %s28, 0
      %p123 = por %p121, %p122
      %s125 = sadd.s32 %s124, 1
      %p128 = scmp.eq.s32.totalorder %s22, 1
      %p129 = scmp.ne.s32.totalorder %s124, %s126
      %p130 = scmp.eq.s32.totalorder %s22, 0
      %p131 = por %p129, %p130
      %p132 = scmp.ne.s32.totalorder %s124, %s126
      %p133 = scmp.eq.s32.totalorder %s27, 1
      %p134 = por %p132, %p133
      %p135 = scmp.ne.s32.totalorder %s126, %s127
      %p136 = scmp.eq.s32.totalorder %s27, 0
      %p137 = por %p135, %p136
      %p138 = scmp.ne.s32.totalorder %s126, %s127
      %p139 = scmp.eq.s32.totalorder %s28, 1
      %p140 = por %p138, %p139
      %p142 = scmp.ne.s32.totalorder %s127, %s141
      %p143 = scmp.eq.s32.totalorder %s28, 0
      %p144 = por %p142, %p143
      %s146 = sadd.s32 %s145, 1
      %p149 = scmp.eq.s32.totalorder %s22, 1
      %p150 = scmp.ne.s32.totalorder %s145, %s147
      %p151 = scmp.eq.s32.totalorder %s22, 0
      %p152 = por %p150, %p151
      %p153 = scmp.ne.s32.totalorder %s145, %s147
      %p154 = scmp.eq.s32.totalorder %s27, 1
      %p155 = por %p153, %p154
      %p156 = scmp.ne.s32.totalorder %s147, %s148
      %p157 = scmp.eq.s32.totalorder %s27, 0
      %p158 = por %p156, %p157
      %p159 = scmp.ne.s32.totalorder %s147, %s148
      %p160 = scmp.eq.s32.totalorder %s28, 1
      %p161 = por %p159, %p160
      %p163 = scmp.ne.s32.totalorder %s148, %s162
      %p164 = scmp.eq.s32.totalorder %s28, 0
      %p165 = por %p163, %p164
      %s166 = ssub.s32 %s22, %s29
      %p167 = scmp.eq.s32.totalorder %s166, 0
      %s169 = sadd.s32 %s168, 1
      %s170 = scalar_select %p167, %s168, %s169
      %p173 = pneg %p167
      %p174 = scmp.eq.s32.totalorder %s22, 1
      %p175 = por %p173, %p174
      %p176 = scmp.ne.s32.totalorder %s168, %s171
      %p177 = scmp.eq.s32.totalorder %s22, 0
      %p178 = por %p176, %p177
      %p179 = scmp.ne.s32.totalorder %s168, %s171
      %p180 = scmp.eq.s32.totalorder %s27, 1
      %p181 = por %p179, %p180
      %p182 = scmp.ne.s32.totalorder %s171, %s172
      %p183 = scmp.eq.s32.totalorder %s27, 0
      %p184 = por %p182, %p183
      %p185 = scmp.ne.s32.totalorder %s171, %s172
      %p186 = scmp.eq.s32.totalorder %s28, 1
      %p187 = por %p185, %p186
      %p189 = scmp.ne.s32.totalorder %s172, %s188
      %p190 = scmp.eq.s32.totalorder %s28, 0
      %p191 = por %p189, %p190
      %p192 = scmp.le.s32.totalorder 1, %s22
      %p193 = scmp.lt.s32.totalorder %s22, 3
      %p194 = pnand %p192, %p193
      %p195 = pneg %p194
      // Predicated region
      $region9: #{tpu_custom_call.1} parent=5 // pred_check
        _
      $region10: #{tpu_custom_call.1} parent=5 // pred_check_branch
        %197 = sbr.rel (%p194) target = $region12
      $region11: #{tpu_custom_call.1} parent=5 // pred_region
        %s198 = ssub.s32 %s22, 1
        // Predicated region
        $region13: #{tpu_custom_call.1} parent=11 // pred_check
          %p199 = pneg %p95
        $region14: #{tpu_custom_call.1} parent=11 // pred_check_branch
          %201 = sbr.rel (%p199) target = $region16
        $region15: #{tpu_custom_call.1} parent=11 // pred_region
          %s203 = ssub.s32 512, 512
          %204 = vsyncadd [#allocation6], %s203
          %s205 = sshll.u32 [#allocation7], 4
          %s206 = int_to_ptr.vmem [resolvable:$true] %s205
          %211 = dma.hbm_to_vmem [thread:$0]  %s2, 512, %s206, [#allocation6], 128, 128, 8
        $region16: #{tpu_custom_call.1} parent=11 // pred_fallthru
          _
        // Predicated region
        $region17: #{tpu_custom_call.1} parent=11 // pred_check
          %p212 = pneg %p116
        $region18: #{tpu_custom_call.1} parent=11 // pred_check_branch
          %214 = sbr.rel (%p212) target = $region20
        $region19: #{tpu_custom_call.1} parent=11 // pred_region
          %s216 = ssub.s32 768, 768
          %217 = vsyncadd [#allocation9], %s216
          %s218 = sshll.u32 [#allocation8], 4
          %s219 = int_to_ptr.vmem [resolvable:$true] %s218
          %224 = dma.hbm_to_vmem [thread:$0]  %s3, 768, %s219, [#allocation9], 128, 128, 8
        $region20: #{tpu_custom_call.1} parent=11 // pred_fallthru
          _
        // Predicated region
        $region21: #{tpu_custom_call.1} parent=11 // pred_check
          %p225 = pneg %p137
        $region22: #{tpu_custom_call.1} parent=11 // pred_check_branch
          %227 = sbr.rel (%p225) target = $region24
        $region23: #{tpu_custom_call.1} parent=11 // pred_region
          %s229 = ssub.s32 512, 512
          %230 = vsyncadd [#allocation9], %s229
          %s231 = sshll.u32 [#allocation10], 4
          %s232 = int_to_ptr.vmem [resolvable:$true] %s231
          %237 = dma.hbm_to_vmem [thread:$0]  %s4, 512, %s232, [#allocation9], 128, 128, 8
        $region24: #{tpu_custom_call.1} parent=11 // pred_fallthru
          _
        // Predicated region
        $region25: #{tpu_custom_call.1} parent=11 // pred_check
          %p238 = pneg %p158
        $region26: #{tpu_custom_call.1} parent=11 // pred_check_branch
          %240 = sbr.rel (%p238) target = $region28
        $region27: #{tpu_custom_call.1} parent=11 // pred_region
          _
        $region28: #{tpu_custom_call.1} parent=11 // pred_fallthru
          _
      $region12: #{tpu_custom_call.1} parent=5 // pred_fallthru
        _
      %p241 = scmp.lt.s32.totalorder %s22, 2
      // Predicated region
      $region29: #{tpu_custom_call.1} parent=5 // pred_check
        %p242 = pneg %p241
      $region30: #{tpu_custom_call.1} parent=5 // pred_check_branch
        %244 = sbr.rel (%p242) target = $region32
      $region31: #{tpu_custom_call.1} parent=5 // pred_region
        // Predicated region
        $region33: #{tpu_custom_call.1} parent=31 // pred_check
          %p245 = pneg %p42
        $region34: #{tpu_custom_call.1} parent=31 // pred_check_branch
          %247 = sbr.rel (%p245) target = $region36
        $region35: #{tpu_custom_call.1} parent=31 // pred_region
          %s248 = sand.u32 %s32, 1
          %s249 = scalar_lea.sflag [#allocation3], %s248
          %s250 = sand.u32 %s32, 1
          %s251 = smul.addr %s250, 8
          %s252 = scalar_lea.vmem [#allocation2], %s251
          %s254 = ssub.s32 128, 128
          %255 = vsyncadd %s249, %s254
          %s256 = smul.addr %s22, 128
          %s257 = scalar_lea.hbm %s0, %s256
          %s259 = sshll.u32 %s252, 4
          %s260 = int_to_ptr.vmem [resolvable:$true] %s259
          %262 = dma.hbm_to_vmem [thread:$0]  %s257, 128, %s260, %s249
        $region36: #{tpu_custom_call.1} parent=31 // pred_fallthru
          _
        // Predicated region
        $region37: #{tpu_custom_call.1} parent=31 // pred_check
          %p263 = pneg %p68
        $region38: #{tpu_custom_call.1} parent=31 // pred_check_branch
          %265 = sbr.rel (%p263) target = $region40
        $region39: #{tpu_custom_call.1} parent=31 // pred_region
          %s266 = sand.u32 %s22, 1
          %s267 = scalar_lea.sflag [#allocation6], %s266
          %s268 = sand.u32 %s58, 1
          %s269 = smul.addr %s268, 16
          %s270 = scalar_lea.vmem [#allocation5], %s269
          %s272 = ssub.s32 256, 256
          %273 = vsyncadd %s267, %s272
          %s274 = smul.addr %s22, 2
          %s275 = smul.addr %s274, 128
          %s276 = scalar_lea.hbm %s1, %s275
          %s277 = sshll.u32 %s270, 4
          %s278 = int_to_ptr.vmem [resolvable:$true] %s277
          %283 = dma.hbm_to_vmem [thread:$0]  %s276, 256, %s278, %s267, 128, 128, 8
        $region40: #{tpu_custom_call.1} parent=31 // pred_fallthru
          _
      $region32: #{tpu_custom_call.1} parent=5 // pred_fallthru
        _
      %p284 = scmp.le.s32.totalorder 1, %s22
      %p285 = scmp.lt.s32.totalorder %s22, 3
      %p286 = pnand %p284, %p285
      %p287 = pneg %p286
      // Predicated region
      $region41: #{tpu_custom_call.1} parent=5 // pred_check
        _
      $region42: #{tpu_custom_call.1} parent=5 // pred_check_branch
        %289 = sbr.rel (%p286) target = $region44
      $region43: #{tpu_custom_call.1} parent=5 // pred_region
        %s290 = ssub.s32 %s22, 1
        %s291 = sand.u32 %s35, 1
        %s292 = scalar_lea.sflag [#allocation3], %s291
        %s293 = sand.u32 %s35, 1
        %s294 = smul.addr %s293, 8
        %s295 = scalar_lea.vmem [#allocation2], %s294
        // Predicated region
        $region45: #{tpu_custom_call.1} parent=43 // pred_check
          %p296 = pneg %p48
        $region46: #{tpu_custom_call.1} parent=43 // pred_check_branch
          %298 = sbr.rel (%p296) target = $region48
        $region47: #{tpu_custom_call.1} parent=43 // pred_region
          %299 = dma.done %s292, 128
        $region48: #{tpu_custom_call.1} parent=43 // pred_fallthru
          _
        %s300 = sand.u32 %s27, 1
        %s301 = scalar_lea.sflag [#allocation6], %s300
        %s302 = sand.u32 %s61, 1
        %s303 = smul.addr %s302, 16
        %s304 = scalar_lea.vmem [#allocation5], %s303
        // Predicated region
        $region49: #{tpu_custom_call.1} parent=43 // pred_check
          %p305 = pneg %p74
        $region50: #{tpu_custom_call.1} parent=43 // pred_check_branch
          %307 = sbr.rel (%p305) target = $region52
        $region51: #{tpu_custom_call.1} parent=43 // pred_region
          %308 = dma.done %s301, 256
        $region52: #{tpu_custom_call.1} parent=43 // pred_fallthru
          _
        // Predicated region
        $region53: #{tpu_custom_call.1} parent=43 // pred_check
          %p309 = pneg %p95
        $region54: #{tpu_custom_call.1} parent=43 // pred_check_branch
          %311 = sbr.rel (%p309) target = $region56
        $region55: #{tpu_custom_call.1} parent=43 // pred_region
          %312 = dma.done [#allocation6], 512
        $region56: #{tpu_custom_call.1} parent=43 // pred_fallthru
          _
        // Predicated region
        $region57: #{tpu_custom_call.1} parent=43 // pred_check
          %p313 = pneg %p116
        $region58: #{tpu_custom_call.1} parent=43 // pred_check_branch
          %315 = sbr.rel (%p313) target = $region60
        $region59: #{tpu_custom_call.1} parent=43 // pred_region
          %316 = dma.done [#allocation9], 768
        $region60: #{tpu_custom_call.1} parent=43 // pred_fallthru
          _
        // Predicated region
        $region61: #{tpu_custom_call.1} parent=43 // pred_check
          %p317 = pneg %p137
        $region62: #{tpu_custom_call.1} parent=43 // pred_check_branch
          %319 = sbr.rel (%p317) target = $region64
        $region63: #{tpu_custom_call.1} parent=43 // pred_region
          %320 = dma.done [#allocation9], 512
        $region64: #{tpu_custom_call.1} parent=43 // pred_fallthru
          _
        %s321 = sand.u32 %s35, 1
        %s322 = scalar_lea.sflag [#allocation3], %s321
        %s323 = sand.u32 %s35, 1
        %s324 = smul.addr %s323, 8
        %s325 = scalar_lea.vmem [#allocation2], %s324
        %p326 = pneg %p48
        %p327 = pneg %p45
        %s328 = sand.u32 %s27, 1
        %s329 = scalar_lea.sflag [#allocation6], %s328
        %s330 = sand.u32 %s61, 1
        %s331 = smul.addr %s330, 16
        %s332 = scalar_lea.vmem [#allocation5], %s331
        %p333 = pneg %p74
        %p334 = pneg %p71
        %p335 = pneg %p95
        %p336 = pneg %p92
        %p337 = pneg %p116
        %p338 = pneg %p113
        %p339 = pneg %p137
        %p340 = pneg %p134
        %p341 = pneg %p158
        %p342 = pneg %p155
        %p343 = pneg %p184
        %p344 = pneg %p181
        %s345 = sand.u32 %s171, 1
        %s346 = scalar_lea.sflag [#allocation4], %s345
        %s347 = sand.u32 %s171, 1
        %s348 = smul.addr %s347, 8
        %s349 = scalar_lea.vmem [#allocation11], %s348
        %v350 = vld [vmem:[%s295] sm:$0xff]
        %v351 = vld [vmem:[#allocation7] sm:$0xff]
        %v352 = vld [vmem:[#allocation7 + $0x8] sm:$0xff]
        %v353 = vld [vmem:[#allocation7 + $0x10] sm:$0xff]
        %v354 = vld [vmem:[#allocation7 + $0x18] sm:$0xff]
        %vm355 = vcmask 261120
        %v357 = vsel %vm355, %v350, 0
        %359 = vmatprep.subr.mxu0 0.0
        %360 = vmatpush1.msra.mxu0 %v351
        %361 = vmatprep.subr.mxu0 0.0
        %362 = vmatpush1.msra.mxu0 %v352
        %363 = vmatprep.subr.mxu0 0.0
        %364 = vmatpush1.msra.mxu0 %v353
        %365 = vmatprep.subr.mxu0 0.0
        %366 = vmatpush1.msra.mxu0 %v354
        %367 = vmatprep.subr.mxu0 0.0
        %368 = vmatpush1.msra.mxu0 0.0
        %369 = vmatprep.subr.mxu0 0.0
        %370 = vmatpush1.msra.mxu0 0.0
        %371 = vmatprep.subr.mxu0 0.0
        %372 = vmatpush1.msra.mxu0 0.0
        %373 = vmatprep.subr.mxu0 0.0
        %374 = vmatpush1.msra.mxu0 0.0
        %375 = vmatprep.subr.mxu0 0.0
        %376 = vmatpush1.msra.mxu0 0.0
        %377 = vmatprep.subr.mxu0 0.0
        %378 = vmatpush1.msra.mxu0 0.0
        %379 = vmatprep.subr.mxu0 0.0
        %380 = vmatpush1.msra.mxu0 0.0
        %381 = vmatprep.subr.mxu0 0.0
        %382 = vmatpush1.msra.mxu0 0.0
        %383 = vmatprep.subr.mxu0 0.0
        %384 = vmatpush1.msra.mxu0 0.0
        %385 = vmatprep.subr.mxu0 0.0
        %386 = vmatpush1.msra.mxu0 0.0
        %387 = vmatprep.subr.mxu0 0.0
        %388 = vmatpush1.msra.mxu0 0.0
        %389 = vmatprep.subr.mxu0 0.0
        %390 = vmatpush1.msra.mxu0 0.0
        %391 = vmatprep.subr.mxu0 0.0
        %392 = vmatpush1.msra.mxu0 0.0
        %393 = vmatprep.subr.mxu0 0.0
        %394 = vmatpush1.msra.mxu0 0.0
        %395 = vmatprep.subr.mxu0 0.0
        %396 = vmatpush1.msra.mxu0 0.0
        %397 = vmatprep.subr.mxu0 0.0
        %398 = vmatpush1.msra.mxu0 0.0
        %399 = vmatprep.subr.mxu0 0.0
        %400 = vmatpush1.msra.mxu0 0.0
        %401 = vmatprep.subr.mxu0 0.0
        %402 = vmatpush1.msra.mxu0 0.0
        %403 = vmatprep.subr.mxu0 0.0
        %404 = vmatpush1.msra.mxu0 0.0
        %405 = vmatprep.subr.mxu0 0.0
        %406 = vmatpush1.msra.mxu0 0.0
        %407 = vmatprep.subr.mxu0 0.0
        %408 = vmatpush1.msra.mxu0 0.0
        %409 = vmatprep.subr.mxu0 0.0
        %410 = vmatpush1.msra.mxu0 0.0
        %411 = vmatprep.subr.mxu0 0.0
        %412 = vmatpush1.msra.mxu0 0.0
        %413 = vmatprep.subr.mxu0 0.0
        %414 = vmatpush1.msra.mxu0 0.0
        %415 = vmatprep.subr.mxu0 0.0
        %416 = vmatpush1.msra.mxu0 0.0
        %417 = vmatprep.subr.mxu0 0.0
        %418 = vmatpush1.msra.mxu0 0.0
        %419 = vmatprep.subr.mxu0 0.0
        %420 = vmatpush1.msra.mxu0 0.0
        %421 = vmatprep.subr.mxu0 0.0
        %422 = vmatpush1.msra.mxu0 0.0
        %423 = vmatprep.mubr.f32.mxu0 0.0
        %424 = vmatmul.mubr.f32.gmra.mrb[0].mxu0 %v357
        %v425 = vpop.f32.mrb[0].mxu0
        %v426 = vadd.f32 0.0, %v425
        %v427 = vpop.f32.mrb[0].mxu0
        %428 = vdwg.mxu0
        %v429 = vld [vmem:[%s304] sm:$0xff]
        %v430 = vld [vmem:[%s304 + $0x8] sm:$0xff]
        %v431 = vld [vmem:[#allocation8] sm:$0xff]
        %v432 = vld [vmem:[#allocation8 + $0x8] sm:$0xff]
        %v433 = vld [vmem:[#allocation8 + $0x10] sm:$0xff]
        %v434 = vld [vmem:[#allocation8 + $0x18] sm:$0xff]
        %v435 = vld [vmem:[#allocation8 + $0x20] sm:$0xff]
        %v436 = vld [vmem:[#allocation8 + $0x28] sm:$0xff]
        %vm437 = vcmask 392192
        %v439 = vsel %vm437, %v429, 0
        %v442 = vsel %vm437, %v430, 0
        %444 = vmatprep.subr.mxu0 0.0
        %445 = vmatpush1.msra.mxu0 %v431
        %446 = vmatprep.subr.mxu0 0.0
        %447 = vmatpush1.msra.mxu0 %v432
        %448 = vmatprep.subr.mxu0 0.0
        %449 = vmatpush1.msra.mxu0 %v433
        %450 = vmatprep.subr.mxu0 0.0
        %451 = vmatpush1.msra.mxu0 %v434
        %452 = vmatprep.subr.mxu0 0.0
        %453 = vmatpush1.msra.mxu0 %v435
        %454 = vmatprep.subr.mxu0 0.0
        %455 = vmatpush1.msra.mxu0 %v436
        %456 = vmatprep.subr.mxu0 0.0
        %457 = vmatpush1.msra.mxu0 0.0
        %458 = vmatprep.subr.mxu0 0.0
        %459 = vmatpush1.msra.mxu0 0.0
        %460 = vmatprep.subr.mxu0 0.0
        %461 = vmatpush1.msra.mxu0 0.0
        %462 = vmatprep.subr.mxu0 0.0
        %463 = vmatpush1.msra.mxu0 0.0
        %464 = vmatprep.subr.mxu0 0.0
        %465 = vmatpush1.msra.mxu0 0.0
        %466 = vmatprep.subr.mxu0 0.0
        %467 = vmatpush1.msra.mxu0 0.0
        %468 = vmatprep.subr.mxu0 0.0
        %469 = vmatpush1.msra.mxu0 0.0
        %470 = vmatprep.subr.mxu0 0.0
        %471 = vmatpush1.msra.mxu0 0.0
        %472 = vmatprep.subr.mxu0 0.0
        %473 = vmatpush1.msra.mxu0 0.0
        %474 = vmatprep.subr.mxu0 0.0
        %475 = vmatpush1.msra.mxu0 0.0
        %476 = vmatprep.subr.mxu0 0.0
        %477 = vmatpush1.msra.mxu0 0.0
        %478 = vmatprep.subr.mxu0 0.0
        %479 = vmatpush1.msra.mxu0 0.0
        %480 = vmatprep.subr.mxu0 0.0
        %481 = vmatpush1.msra.mxu0 0.0
        %482 = vmatprep.subr.mxu0 0.0
        %483 = vmatpush1.msra.mxu0 0.0
        %484 = vmatprep.subr.mxu0 0.0
        %485 = vmatpush1.msra.mxu0 0.0
        %486 = vmatprep.subr.mxu0 0.0
        %487 = vmatpush1.msra.mxu0 0.0
        %488 = vmatprep.subr.mxu0 0.0
        %489 = vmatpush1.msra.mxu0 0.0
        %490 = vmatprep.subr.mxu0 0.0
        %491 = vmatpush1.msra.mxu0 0.0
        %492 = vmatprep.subr.mxu0 0.0
        %493 = vmatpush1.msra.mxu0 0.0
        %494 = vmatprep.subr.mxu0 0.0
        %495 = vmatpush1.msra.mxu0 0.0
        %496 = vmatprep.subr.mxu0 0.0
        %497 = vmatpush1.msra.mxu0 0.0
        %498 = vmatprep.subr.mxu0 0.0
        %499 = vmatpush1.msra.mxu0 0.0
        %500 = vmatprep.subr.mxu0 0.0
        %501 = vmatpush1.msra.mxu0 0.0
        %502 = vmatprep.subr.mxu0 0.0
        %503 = vmatpush1.msra.mxu0 0.0
        %504 = vmatprep.subr.mxu0 0.0
        %505 = vmatpush1.msra.mxu0 0.0
        %506 = vmatprep.subr.mxu0 0.0
        %507 = vmatpush1.msra.mxu0 0.0
        %508 = vmatprep.mubr.f32.mxu0 0.0
        %509 = vmatmul.mubr.f32.gmra.mrb[0].mxu0 %v439
        %v510 = vpop.f32.mrb[0].mxu0
        %v511 = vadd.f32 0.0, %v510
        %v512 = vpop.f32.mrb[0].mxu0
        %513 = vmatprep.mubr.f32.mxu0 0.0
        %514 = vmatmul.mubr.f32.gmra.mrb[0].mxu0 %v442
        %v515 = vpop.f32.mrb[0].mxu0
        %v516 = vadd.f32 0.0, %v515
        %v517 = vpop.f32.mrb[0].mxu0
        %518 = vdwg.mxu0
        %vm519 = vcmask 31744
        %v521 = vsel %vm519, %v426, 0
        %v524 = vsel %vm519, %v511, 0
        %v527 = vsel %vm519, %v516, 0
        %529 = vmatprep.subr.mxu0 0.0
        %530 = vmatpush1.xpose.msra.mxu0 %v524
        %531 = vmatprep.subr.mxu0 0.0
        %532 = vmatpush1.xpose.msra.mxu0 %v527
        %533 = vmatprep.subr.mxu0 0.0
        %534 = vmatpush1.xpose.msra.mxu0 0.0
        %535 = vmatprep.subr.mxu0 0.0
        %536 = vmatpush1.xpose.msra.mxu0 0.0
        %537 = vmatprep.subr.mxu0 0.0
        %538 = vmatpush1.xpose.msra.mxu0 0.0
        %539 = vmatprep.subr.mxu0 0.0
        %540 = vmatpush1.xpose.msra.mxu0 0.0
        %541 = vmatprep.subr.mxu0 0.0
        %542 = vmatpush1.xpose.msra.mxu0 0.0
        %543 = vmatprep.subr.mxu0 0.0
        %544 = vmatpush1.xpose.msra.mxu0 0.0
        %545 = vmatprep.subr.mxu0 0.0
        %546 = vmatpush1.xpose.msra.mxu0 0.0
        %547 = vmatprep.subr.mxu0 0.0
        %548 = vmatpush1.xpose.msra.mxu0 0.0
        %549 = vmatprep.subr.mxu0 0.0
        %550 = vmatpush1.xpose.msra.mxu0 0.0
        %551 = vmatprep.subr.mxu0 0.0
        %552 = vmatpush1.xpose.msra.mxu0 0.0
        %553 = vmatprep.subr.mxu0 0.0
        %554 = vmatpush1.xpose.msra.mxu0 0.0
        %555 = vmatprep.subr.mxu0 0.0
        %556 = vmatpush1.xpose.msra.mxu0 0.0
        %557 = vmatprep.subr.mxu0 0.0
        %558 = vmatpush1.xpose.msra.mxu0 0.0
        %559 = vmatprep.subr.mxu0 0.0
        %560 = vmatpush1.xpose.msra.mxu0 0.0
        %561 = vmatprep.subr.mxu0 0.0
        %562 = vmatpush1.xpose.msra.mxu0 0.0
        %563 = vmatprep.subr.mxu0 0.0
        %564 = vmatpush1.xpose.msra.mxu0 0.0
        %565 = vmatprep.subr.mxu0 0.0
        %566 = vmatpush1.xpose.msra.mxu0 0.0
        %567 = vmatprep.subr.mxu0 0.0
        %568 = vmatpush1.xpose.msra.mxu0 0.0
        %569 = vmatprep.subr.mxu0 0.0
        %570 = vmatpush1.xpose.msra.mxu0 0.0
        %571 = vmatprep.subr.mxu0 0.0
        %572 = vmatpush1.xpose.msra.mxu0 0.0
        %573 = vmatprep.subr.mxu0 0.0
        %574 = vmatpush1.xpose.msra.mxu0 0.0
        %575 = vmatprep.subr.mxu0 0.0
        %576 = vmatpush1.xpose.msra.mxu0 0.0
        %577 = vmatprep.subr.mxu0 0.0
        %578 = vmatpush1.xpose.msra.mxu0 0.0
        %579 = vmatprep.subr.mxu0 0.0
        %580 = vmatpush1.xpose.msra.mxu0 0.0
        %581 = vmatprep.subr.mxu0 0.0
        %582 = vmatpush1.xpose.msra.mxu0 0.0
        %583 = vmatprep.subr.mxu0 0.0
        %584 = vmatpush1.xpose.msra.mxu0 0.0
        %585 = vmatprep.subr.mxu0 0.0
        %586 = vmatpush1.xpose.msra.mxu0 0.0
        %587 = vmatprep.subr.mxu0 0.0
        %588 = vmatpush1.xpose.msra.mxu0 0.0
        %589 = vmatprep.subr.mxu0 0.0
        %590 = vmatpush1.xpose.msra.mxu0 0.0
        %591 = vmatprep.subr.mxu0 0.0
        %592 = vmatpush1.xpose.msra.mxu0 0.0
        %593 = vmatprep.mubr.f32.mxu0 0.0
        %594 = vmatmul.mubr.f32.gmra.mrb[0].mxu0 %v521
        %v595 = vpop.f32.mrb[0].mxu0
        %v596 = vadd.f32 0.0, %v595
        %v597 = vpop.f32.mrb[0].mxu0
        %598 = vdwg.mxu0
        %vm599 = vcmask 130048
        %v600 = vsel %vm599, %v596, -inf
        %601 = vmax.xlane.f32.xlu0 %v600
        %v602 = vpop.xlane.xlu0 %601
        %v603 = vsub.f32 %v596, %v602
        %v604 = vmul.f32 %v603, 1.442695
        %v605 = vpow.pop %v604
        %v606 = vsel %vm599, %v605, 0.0
        %607 = vadd.xlane.f32.xlu0 %v606
        %v608 = vpop.xlane.xlu0 %607
        %v609 = vrcp.pop %v608
        %v610 = vmul.f32 %v605, %v609
        %611 = vrot.lane.b32.xlu0 %v511, 96
        %v612 = vpop.permute.xlu0 %611
        %613 = vrot.lane.b32.xlu0 %v516, 96
        %v614 = vpop.permute.xlu0 %613
        %v618 = vsel %vm599, %v610, 0
        %620 = vmatprep.subr.mxu0 0.0
        %621 = vmatpush1.msra.mxu0 %v612
        %622 = vmatprep.subr.mxu0 0.0
        %623 = vmatpush1.msra.mxu0 %v614
        %624 = vmatprep.subr.mxu0 0.0
        %625 = vmatpush1.msra.mxu0 0.0
        %626 = vmatprep.subr.mxu0 0.0
        %627 = vmatpush1.msra.mxu0 0.0
        %628 = vmatprep.subr.mxu0 0.0
        %629 = vmatpush1.msra.mxu0 0.0
        %630 = vmatprep.subr.mxu0 0.0
        %631 = vmatpush1.msra.mxu0 0.0
        %632 = vmatprep.subr.mxu0 0.0
        %633 = vmatpush1.msra.mxu0 0.0
        %634 = vmatprep.subr.mxu0 0.0
        %635 = vmatpush1.msra.mxu0 0.0
        %636 = vmatprep.subr.mxu0 0.0
        %637 = vmatpush1.msra.mxu0 0.0
        %638 = vmatprep.subr.mxu0 0.0
        %639 = vmatpush1.msra.mxu0 0.0
        %640 = vmatprep.subr.mxu0 0.0
        %641 = vmatpush1.msra.mxu0 0.0
        %642 = vmatprep.subr.mxu0 0.0
        %643 = vmatpush1.msra.mxu0 0.0
        %644 = vmatprep.subr.mxu0 0.0
        %645 = vmatpush1.msra.mxu0 0.0
        %646 = vmatprep.subr.mxu0 0.0
        %647 = vmatpush1.msra.mxu0 0.0
        %648 = vmatprep.subr.mxu0 0.0
        %649 = vmatpush1.msra.mxu0 0.0
        %650 = vmatprep.subr.mxu0 0.0
        %651 = vmatpush1.msra.mxu0 0.0
        %652 = vmatprep.subr.mxu0 0.0
        %653 = vmatpush1.msra.mxu0 0.0
        %654 = vmatprep.subr.mxu0 0.0
        %655 = vmatpush1.msra.mxu0 0.0
        %656 = vmatprep.subr.mxu0 0.0
        %657 = vmatpush1.msra.mxu0 0.0
        %658 = vmatprep.subr.mxu0 0.0
        %659 = vmatpush1.msra.mxu0 0.0
        %660 = vmatprep.subr.mxu0 0.0
        %661 = vmatpush1.msra.mxu0 0.0
        %662 = vmatprep.subr.mxu0 0.0
        %663 = vmatpush1.msra.mxu0 0.0
        %664 = vmatprep.subr.mxu0 0.0
        %665 = vmatpush1.msra.mxu0 0.0
        %666 = vmatprep.subr.mxu0 0.0
        %667 = vmatpush1.msra.mxu0 0.0
        %668 = vmatprep.subr.mxu0 0.0
        %669 = vmatpush1.msra.mxu0 0.0
        %670 = vmatprep.subr.mxu0 0.0
        %671 = vmatpush1.msra.mxu0 0.0
        %672 = vmatprep.subr.mxu0 0.0
        %673 = vmatpush1.msra.mxu0 0.0
        %674 = vmatprep.subr.mxu0 0.0
        %675 = vmatpush1.msra.mxu0 0.0
        %676 = vmatprep.subr.mxu0 0.0
        %677 = vmatpush1.msra.mxu0 0.0
        %678 = vmatprep.subr.mxu0 0.0
        %679 = vmatpush1.msra.mxu0 0.0
        %680 = vmatprep.subr.mxu0 0.0
        %681 = vmatpush1.msra.mxu0 0.0
        %682 = vmatprep.subr.mxu0 0.0
        %683 = vmatpush1.msra.mxu0 0.0
        %684 = vmatprep.mubr.f32.mxu0 0.0
        %685 = vmatmul.mubr.f32.gmra.mrb[0].mxu0 %v618
        %v686 = vpop.f32.mrb[0].mxu0
        %v687 = vadd.f32 0.0, %v686
        %v688 = vpop.f32.mrb[0].mxu0
        %689 = vdwg.mxu0
        %690 = vrot.lane.b32.xlu0 %v426, 124
        %v691 = vpop.permute.xlu0 %690
        %692 = vrot.lane.b32.xlu0 %v511, 124
        %v693 = vpop.permute.xlu0 %692
        %694 = vrot.lane.b32.xlu0 %v516, 124
        %v695 = vpop.permute.xlu0 %694
        %v696 = vsel %vm519, %v691, 0
        %v698 = vsel %vm519, %v693, 0
        %v700 = vsel %vm519, %v695, 0
        %702 = vmatprep.subr.mxu0 0.0
        %703 = vmatpush1.xpose.msra.mxu0 %v698
        %704 = vmatprep.subr.mxu0 0.0
        %705 = vmatpush1.xpose.msra.mxu0 %v700
        %706 = vmatprep.subr.mxu0 0.0
        %707 = vmatpush1.xpose.msra.mxu0 0.0
        %708 = vmatprep.subr.mxu0 0.0
        %709 = vmatpush1.xpose.msra.mxu0 0.0
        %710 = vmatprep.subr.mxu0 0.0
        %711 = vmatpush1.xpose.msra.mxu0 0.0
        %712 = vmatprep.subr.mxu0 0.0
        %713 = vmatpush1.xpose.msra.mxu0 0.0
        %714 = vmatprep.subr.mxu0 0.0
        %715 = vmatpush1.xpose.msra.mxu0 0.0
        %716 = vmatprep.subr.mxu0 0.0
        %717 = vmatpush1.xpose.msra.mxu0 0.0
        %718 = vmatprep.subr.mxu0 0.0
        %719 = vmatpush1.xpose.msra.mxu0 0.0
        %720 = vmatprep.subr.mxu0 0.0
        %721 = vmatpush1.xpose.msra.mxu0 0.0
        %722 = vmatprep.subr.mxu0 0.0
        %723 = vmatpush1.xpose.msra.mxu0 0.0
        %724 = vmatprep.subr.mxu0 0.0
        %725 = vmatpush1.xpose.msra.mxu0 0.0
        %726 = vmatprep.subr.mxu0 0.0
        %727 = vmatpush1.xpose.msra.mxu0 0.0
        %728 = vmatprep.subr.mxu0 0.0
        %729 = vmatpush1.xpose.msra.mxu0 0.0
        %730 = vmatprep.subr.mxu0 0.0
        %731 = vmatpush1.xpose.msra.mxu0 0.0
        %732 = vmatprep.subr.mxu0 0.0
        %733 = vmatpush1.xpose.msra.mxu0 0.0
        %734 = vmatprep.subr.mxu0 0.0
        %735 = vmatpush1.xpose.msra.mxu0 0.0
        %736 = vmatprep.subr.mxu0 0.0
        %737 = vmatpush1.xpose.msra.mxu0 0.0
        %738 = vmatprep.subr.mxu0 0.0
        %739 = vmatpush1.xpose.msra.mxu0 0.0
        %740 = vmatprep.subr.mxu0 0.0
        %741 = vmatpush1.xpose.msra.mxu0 0.0
        %742 = vmatprep.subr.mxu0 0.0
        %743 = vmatpush1.xpose.msra.mxu0 0.0
        %744 = vmatprep.subr.mxu0 0.0
        %745 = vmatpush1.xpose.msra.mxu0 0.0
        %746 = vmatprep.subr.mxu0 0.0
        %747 = vmatpush1.xpose.msra.mxu0 0.0
        %748 = vmatprep.subr.mxu0 0.0
        %749 = vmatpush1.xpose.msra.mxu0 0.0
        %750 = vmatprep.subr.mxu0 0.0
        %751 = vmatpush1.xpose.msra.mxu0 0.0
        %752 = vmatprep.subr.mxu0 0.0
        %753 = vmatpush1.xpose.msra.mxu0 0.0
        %754 = vmatprep.subr.mxu0 0.0
        %755 = vmatpush1.xpose.msra.mxu0 0.0
        %756 = vmatprep.subr.mxu0 0.0
        %757 = vmatpush1.xpose.msra.mxu0 0.0
        %758 = vmatprep.subr.mxu0 0.0
        %759 = vmatpush1.xpose.msra.mxu0 0.0
        %760 = vmatprep.subr.mxu0 0.0
        %761 = vmatpush1.xpose.msra.mxu0 0.0
        %762 = vmatprep.subr.mxu0 0.0
        %763 = vmatpush1.xpose.msra.mxu0 0.0
        %764 = vmatprep.subr.mxu0 0.0
        %765 = vmatpush1.xpose.msra.mxu0 0.0
        %766 = vmatprep.mubr.f32.mxu0 0.0
        %767 = vmatmul.mubr.f32.gmra.mrb[0].mxu0 %v696
        %v768 = vpop.f32.mrb[0].mxu0
        %v769 = vadd.f32 0.0, %v768
        %v770 = vpop.f32.mrb[0].mxu0
        %771 = vdwg.mxu0
        %v772 = vsel %vm599, %v769, -inf
        %773 = vmax.xlane.f32.xlu0 %v772
        %v774 = vpop.xlane.xlu0 %773
        %v775 = vsub.f32 %v769, %v774
        %v776 = vmul.f32 %v775, 1.442695
        %v777 = vpow.pop %v776
        %v778 = vsel %vm599, %v777, 0.0
        %779 = vadd.xlane.f32.xlu0 %v778
        %v780 = vpop.xlane.xlu0 %779
        %v781 = vrcp.pop %v780
        %v782 = vmul.f32 %v777, %v781
        %783 = vrot.lane.b32.xlu0 %v511, 92
        %v784 = vpop.permute.xlu0 %783
        %785 = vrot.lane.b32.xlu0 %v516, 92
        %v786 = vpop.permute.xlu0 %785
        %v790 = vsel %vm599, %v782, 0
        %792 = vmatprep.subr.mxu0 0.0
        %793 = vmatpush1.msra.mxu0 %v784
        %794 = vmatprep.subr.mxu0 0.0
        %795 = vmatpush1.msra.mxu0 %v786
        %796 = vmatprep.subr.mxu0 0.0
        %797 = vmatpush1.msra.mxu0 0.0
        %798 = vmatprep.subr.mxu0 0.0
        %799 = vmatpush1.msra.mxu0 0.0
        %800 = vmatprep.subr.mxu0 0.0
        %801 = vmatpush1.msra.mxu0 0.0
        %802 = vmatprep.subr.mxu0 0.0
        %803 = vmatpush1.msra.mxu0 0.0
        %804 = vmatprep.subr.mxu0 0.0
        %805 = vmatpush1.msra.mxu0 0.0
        %806 = vmatprep.subr.mxu0 0.0
        %807 = vmatpush1.msra.mxu0 0.0
        %808 = vmatprep.subr.mxu0 0.0
        %809 = vmatpush1.msra.mxu0 0.0
        %810 = vmatprep.subr.mxu0 0.0
        %811 = vmatpush1.msra.mxu0 0.0
        %812 = vmatprep.subr.mxu0 0.0
        %813 = vmatpush1.msra.mxu0 0.0
        %814 = vmatprep.subr.mxu0 0.0
        %815 = vmatpush1.msra.mxu0 0.0
        %816 = vmatprep.subr.mxu0 0.0
        %817 = vmatpush1.msra.mxu0 0.0
        %818 = vmatprep.subr.mxu0 0.0
        %819 = vmatpush1.msra.mxu0 0.0
        %820 = vmatprep.subr.mxu0 0.0
        %821 = vmatpush1.msra.mxu0 0.0
        %822 = vmatprep.subr.mxu0 0.0
        %823 = vmatpush1.msra.mxu0 0.0
        %824 = vmatprep.subr.mxu0 0.0
        %825 = vmatpush1.msra.mxu0 0.0
        %826 = vmatprep.subr.mxu0 0.0
        %827 = vmatpush1.msra.mxu0 0.0
        %828 = vmatprep.subr.mxu0 0.0
        %829 = vmatpush1.msra.mxu0 0.0
        %830 = vmatprep.subr.mxu0 0.0
        %831 = vmatpush1.msra.mxu0 0.0
        %832 = vmatprep.subr.mxu0 0.0
        %833 = vmatpush1.msra.mxu0 0.0
        %834 = vmatprep.subr.mxu0 0.0
        %835 = vmatpush1.msra.mxu0 0.0
        %836 = vmatprep.subr.mxu0 0.0
        %837 = vmatpush1.msra.mxu0 0.0
        %838 = vmatprep.subr.mxu0 0.0
        %839 = vmatpush1.msra.mxu0 0.0
        %840 = vmatprep.subr.mxu0 0.0
        %841 = vmatpush1.msra.mxu0 0.0
        %842 = vmatprep.subr.mxu0 0.0
        %843 = vmatpush1.msra.mxu0 0.0
        %844 = vmatprep.subr.mxu0 0.0
        %845 = vmatpush1.msra.mxu0 0.0
        %846 = vmatprep.subr.mxu0 0.0
        %847 = vmatpush1.msra.mxu0 0.0
        %848 = vmatprep.subr.mxu0 0.0
        %849 = vmatpush1.msra.mxu0 0.0
        %850 = vmatprep.subr.mxu0 0.0
        %851 = vmatpush1.msra.mxu0 0.0
        %852 = vmatprep.subr.mxu0 0.0
        %853 = vmatpush1.msra.mxu0 0.0
        %854 = vmatprep.subr.mxu0 0.0
        %855 = vmatpush1.msra.mxu0 0.0
        %856 = vmatprep.mubr.f32.mxu0 0.0
        %857 = vmatmul.mubr.f32.gmra.mrb[0].mxu0 %v790
        %v858 = vpop.f32.mrb[0].mxu0
        %v859 = vadd.f32 0.0, %v858
        %v860 = vpop.f32.mrb[0].mxu0
        %861 = vdwg.mxu0
        %862 = vrot.lane.b32.xlu0 %v426, 120
        %v863 = vpop.permute.xlu0 %862
        %864 = vrot.lane.b32.xlu0 %v511, 120
        %v865 = vpop.permute.xlu0 %864
        %866 = vrot.lane.b32.xlu0 %v516, 120
        %v867 = vpop.permute.xlu0 %866
        %v868 = vsel %vm519, %v863, 0
        %v870 = vsel %vm519, %v865, 0
        %v872 = vsel %vm519, %v867, 0
        %874 = vmatprep.subr.mxu0 0.0
        %875 = vmatpush1.xpose.msra.mxu0 %v870
        %876 = vmatprep.subr.mxu0 0.0
        %877 = vmatpush1.xpose.msra.mxu0 %v872
        %878 = vmatprep.subr.mxu0 0.0
        %879 = vmatpush1.xpose.msra.mxu0 0.0
        %880 = vmatprep.subr.mxu0 0.0
        %881 = vmatpush1.xpose.msra.mxu0 0.0
        %882 = vmatprep.subr.mxu0 0.0
        %883 = vmatpush1.xpose.msra.mxu0 0.0
        %884 = vmatprep.subr.mxu0 0.0
        %885 = vmatpush1.xpose.msra.mxu0 0.0
        %886 = vmatprep.subr.mxu0 0.0
        %887 = vmatpush1.xpose.msra.mxu0 0.0
        %888 = vmatprep.subr.mxu0 0.0
        %889 = vmatpush1.xpose.msra.mxu0 0.0
        %890 = vmatprep.subr.mxu0 0.0
        %891 = vmatpush1.xpose.msra.mxu0 0.0
        %892 = vmatprep.subr.mxu0 0.0
        %893 = vmatpush1.xpose.msra.mxu0 0.0
        %894 = vmatprep.subr.mxu0 0.0
        %895 = vmatpush1.xpose.msra.mxu0 0.0
        %896 = vmatprep.subr.mxu0 0.0
        %897 = vmatpush1.xpose.msra.mxu0 0.0
        %898 = vmatprep.subr.mxu0 0.0
        %899 = vmatpush1.xpose.msra.mxu0 0.0
        %900 = vmatprep.subr.mxu0 0.0
        %901 = vmatpush1.xpose.msra.mxu0 0.0
        %902 = vmatprep.subr.mxu0 0.0
        %903 = vmatpush1.xpose.msra.mxu0 0.0
        %904 = vmatprep.subr.mxu0 0.0
        %905 = vmatpush1.xpose.msra.mxu0 0.0
        %906 = vmatprep.subr.mxu0 0.0
        %907 = vmatpush1.xpose.msra.mxu0 0.0
        %908 = vmatprep.subr.mxu0 0.0
        %909 = vmatpush1.xpose.msra.mxu0 0.0
        %910 = vmatprep.subr.mxu0 0.0
        %911 = vmatpush1.xpose.msra.mxu0 0.0
        %912 = vmatprep.subr.mxu0 0.0
        %913 = vmatpush1.xpose.msra.mxu0 0.0
        %914 = vmatprep.subr.mxu0 0.0
        %915 = vmatpush1.xpose.msra.mxu0 0.0
        %916 = vmatprep.subr.mxu0 0.0
        %917 = vmatpush1.xpose.msra.mxu0 0.0
        %918 = vmatprep.subr.mxu0 0.0
        %919 = vmatpush1.xpose.msra.mxu0 0.0
        %920 = vmatprep.subr.mxu0 0.0
        %921 = vmatpush1.xpose.msra.mxu0 0.0
        %922 = vmatprep.subr.mxu0 0.0
        %923 = vmatpush1.xpose.msra.mxu0 0.0
        %924 = vmatprep.subr.mxu0 0.0
        %925 = vmatpush1.xpose.msra.mxu0 0.0
        %926 = vmatprep.subr.mxu0 0.0
        %927 = vmatpush1.xpose.msra.mxu0 0.0
        %928 = vmatprep.subr.mxu0 0.0
        %929 = vmatpush1.xpose.msra.mxu0 0.0
        %930 = vmatprep.subr.mxu0 0.0
        %931 = vmatpush1.xpose.msra.mxu0 0.0
        %932 = vmatprep.subr.mxu0 0.0
        %933 = vmatpush1.xpose.msra.mxu0 0.0
        %934 = vmatprep.subr.mxu0 0.0
        %935 = vmatpush1.xpose.msra.mxu0 0.0
        %936 = vmatprep.subr.mxu0 0.0
        %937 = vmatpush1.xpose.msra.mxu0 0.0
        %938 = vmatprep.mubr.f32.mxu0 0.0
        %939 = vmatmul.mubr.f32.gmra.mrb[0].mxu0 %v868
        %v940 = vpop.f32.mrb[0].mxu0
        %v941 = vadd.f32 0.0, %v940
        %v942 = vpop.f32.mrb[0].mxu0
        %943 = vdwg.mxu0
        %v944 = vsel %vm599, %v941, -inf
        %945 = vmax.xlane.f32.xlu0 %v944
        %v946 = vpop.xlane.xlu0 %945
        %v947 = vsub.f32 %v941, %v946
        %v948 = vmul.f32 %v947, 1.442695
        %v949 = vpow.pop %v948
        %v950 = vsel %vm599, %v949, 0.0
        %951 = vadd.xlane.f32.xlu0 %v950
        %v952 = vpop.xlane.xlu0 %951
        %v953 = vrcp.pop %v952
        %v954 = vmul.f32 %v949, %v953
        %955 = vrot.lane.b32.xlu0 %v511, 88
        %v956 = vpop.permute.xlu0 %955
        %957 = vrot.lane.b32.xlu0 %v516, 88
        %v958 = vpop.permute.xlu0 %957
        %v962 = vsel %vm599, %v954, 0
        %964 = vmatprep.subr.mxu0 0.0
        %965 = vmatpush1.msra.mxu0 %v956
        %966 = vmatprep.subr.mxu0 0.0
        %967 = vmatpush1.msra.mxu0 %v958
        %968 = vmatprep.subr.mxu0 0.0
        %969 = vmatpush1.msra.mxu0 0.0
        %970 = vmatprep.subr.mxu0 0.0
        %971 = vmatpush1.msra.mxu0 0.0
        %972 = vmatprep.subr.mxu0 0.0
        %973 = vmatpush1.msra.mxu0 0.0
        %974 = vmatprep.subr.mxu0 0.0
        %975 = vmatpush1.msra.mxu0 0.0
        %976 = vmatprep.subr.mxu0 0.0
        %977 = vmatpush1.msra.mxu0 0.0
        %978 = vmatprep.subr.mxu0 0.0
        %979 = vmatpush1.msra.mxu0 0.0
        %980 = vmatprep.subr.mxu0 0.0
        %981 = vmatpush1.msra.mxu0 0.0
        %982 = vmatprep.subr.mxu0 0.0
        %983 = vmatpush1.msra.mxu0 0.0
        %984 = vmatprep.subr.mxu0 0.0
        %985 = vmatpush1.msra.mxu0 0.0
        %986 = vmatprep.subr.mxu0 0.0
        %987 = vmatpush1.msra.mxu0 0.0
        %988 = vmatprep.subr.mxu0 0.0
        %989 = vmatpush1.msra.mxu0 0.0
        %990 = vmatprep.subr.mxu0 0.0
        %991 = vmatpush1.msra.mxu0 0.0
        %992 = vmatprep.subr.mxu0 0.0
        %993 = vmatpush1.msra.mxu0 0.0
        %994 = vmatprep.subr.mxu0 0.0
        %995 = vmatpush1.msra.mxu0 0.0
        %996 = vmatprep.subr.mxu0 0.0
        %997 = vmatpush1.msra.mxu0 0.0
        %998 = vmatprep.subr.mxu0 0.0
        %999 = vmatpush1.msra.mxu0 0.0
        %1000 = vmatprep.subr.mxu0 0.0
        %1001 = vmatpush1.msra.mxu0 0.0
        %1002 = vmatprep.subr.mxu0 0.0
        %1003 = vmatpush1.msra.mxu0 0.0
        %1004 = vmatprep.subr.mxu0 0.0
        %1005 = vmatpush1.msra.mxu0 0.0
        %1006 = vmatprep.subr.mxu0 0.0
        %1007 = vmatpush1.msra.mxu0 0.0
        %1008 = vmatprep.subr.mxu0 0.0
        %1009 = vmatpush1.msra.mxu0 0.0
        %1010 = vmatprep.subr.mxu0 0.0
        %1011 = vmatpush1.msra.mxu0 0.0
        %1012 = vmatprep.subr.mxu0 0.0
        %1013 = vmatpush1.msra.mxu0 0.0
        %1014 = vmatprep.subr.mxu0 0.0
        %1015 = vmatpush1.msra.mxu0 0.0
        %1016 = vmatprep.subr.mxu0 0.0
        %1017 = vmatpush1.msra.mxu0 0.0
        %1018 = vmatprep.subr.mxu0 0.0
        %1019 = vmatpush1.msra.mxu0 0.0
        %1020 = vmatprep.subr.mxu0 0.0
        %1021 = vmatpush1.msra.mxu0 0.0
        %1022 = vmatprep.subr.mxu0 0.0
        %1023 = vmatpush1.msra.mxu0 0.0
        %1024 = vmatprep.subr.mxu0 0.0
        %1025 = vmatpush1.msra.mxu0 0.0
        %1026 = vmatprep.subr.mxu0 0.0
        %1027 = vmatpush1.msra.mxu0 0.0
        %1028 = vmatprep.mubr.f32.mxu0 0.0
        %1029 = vmatmul.mubr.f32.gmra.mrb[0].mxu0 %v962
        %v1030 = vpop.f32.mrb[0].mxu0
        %v1031 = vadd.f32 0.0, %v1030
        %v1032 = vpop.f32.mrb[0].mxu0
        %1033 = vdwg.mxu0
        %1034 = vrot.lane.b32.xlu0 %v426, 116
        %v1035 = vpop.permute.xlu0 %1034
        %1036 = vrot.lane.b32.xlu0 %v511, 116
        %v1037 = vpop.permute.xlu0 %1036
        %1038 = vrot.lane.b32.xlu0 %v516, 116
        %v1039 = vpop.permute.xlu0 %1038
        %v1040 = vsel %vm519, %v1035, 0
        %v1042 = vsel %vm519, %v1037, 0
        %v1044 = vsel %vm519, %v1039, 0
        %1046 = vmatprep.subr.mxu0 0.0
        %1047 = vmatpush1.xpose.msra.mxu0 %v1042
        %1048 = vmatprep.subr.mxu0 0.0
        %1049 = vmatpush1.xpose.msra.mxu0 %v1044
        %1050 = vmatprep.subr.mxu0 0.0
        %1051 = vmatpush1.xpose.msra.mxu0 0.0
        %1052 = vmatprep.subr.mxu0 0.0
        %1053 = vmatpush1.xpose.msra.mxu0 0.0
        %1054 = vmatprep.subr.mxu0 0.0
        %1055 = vmatpush1.xpose.msra.mxu0 0.0
        %1056 = vmatprep.subr.mxu0 0.0
        %1057 = vmatpush1.xpose.msra.mxu0 0.0
        %1058 = vmatprep.subr.mxu0 0.0
        %1059 = vmatpush1.xpose.msra.mxu0 0.0
        %1060 = vmatprep.subr.mxu0 0.0
        %1061 = vmatpush1.xpose.msra.mxu0 0.0
        %1062 = vmatprep.subr.mxu0 0.0
        %1063 = vmatpush1.xpose.msra.mxu0 0.0
        %1064 = vmatprep.subr.mxu0 0.0
        %1065 = vmatpush1.xpose.msra.mxu0 0.0
        %1066 = vmatprep.subr.mxu0 0.0
        %1067 = vmatpush1.xpose.msra.mxu0 0.0
        %1068 = vmatprep.subr.mxu0 0.0
        %1069 = vmatpush1.xpose.msra.mxu0 0.0
        %1070 = vmatprep.subr.mxu0 0.0
        %1071 = vmatpush1.xpose.msra.mxu0 0.0
        %1072 = vmatprep.subr.mxu0 0.0
        %1073 = vmatpush1.xpose.msra.mxu0 0.0
        %1074 = vmatprep.subr.mxu0 0.0
        %1075 = vmatpush1.xpose.msra.mxu0 0.0
        %1076 = vmatprep.subr.mxu0 0.0
        %1077 = vmatpush1.xpose.msra.mxu0 0.0
        %1078 = vmatprep.subr.mxu0 0.0
        %1079 = vmatpush1.xpose.msra.mxu0 0.0
        %1080 = vmatprep.subr.mxu0 0.0
        %1081 = vmatpush1.xpose.msra.mxu0 0.0
        %1082 = vmatprep.subr.mxu0 0.0
        %1083 = vmatpush1.xpose.msra.mxu0 0.0
        %1084 = vmatprep.subr.mxu0 0.0
        %1085 = vmatpush1.xpose.msra.mxu0 0.0
        %1086 = vmatprep.subr.mxu0 0.0
        %1087 = vmatpush1.xpose.msra.mxu0 0.0
        %1088 = vmatprep.subr.mxu0 0.0
        %1089 = vmatpush1.xpose.msra.mxu0 0.0
        %1090 = vmatprep.subr.mxu0 0.0
        %1091 = vmatpush1.xpose.msra.mxu0 0.0
        %1092 = vmatprep.subr.mxu0 0.0
        %1093 = vmatpush1.xpose.msra.mxu0 0.0
        %1094 = vmatprep.subr.mxu0 0.0
        %1095 = vmatpush1.xpose.msra.mxu0 0.0
        %1096 = vmatprep.subr.mxu0 0.0
        %1097 = vmatpush1.xpose.msra.mxu0 0.0
        %1098 = vmatprep.subr.mxu0 0.0
        %1099 = vmatpush1.xpose.msra.mxu0 0.0
        %1100 = vmatprep.subr.mxu0 0.0
        %1101 = vmatpush1.xpose.msra.mxu0 0.0
        %1102 = vmatprep.subr.mxu0 0.0
        %1103 = vmatpush1.xpose.msra.mxu0 0.0
        %1104 = vmatprep.subr.mxu0 0.0
        %1105 = vmatpush1.xpose.msra.mxu0 0.0
        %1106 = vmatprep.subr.mxu0 0.0
        %1107 = vmatpush1.xpose.msra.mxu0 0.0
        %1108 = vmatprep.subr.mxu0 0.0
        %1109 = vmatpush1.xpose.msra.mxu0 0.0
        %1110 = vmatprep.mubr.f32.mxu0 0.0
        %1111 = vmatmul.mubr.f32.gmra.mrb[0].mxu0 %v1040
        %v1112 = vpop.f32.mrb[0].mxu0
        %v1113 = vadd.f32 0.0, %v1112
        %v1114 = vpop.f32.mrb[0].mxu0
        %1115 = vdwg.mxu0
        %v1116 = vsel %vm599, %v1113, -inf
        %1117 = vmax.xlane.f32.xlu0 %v1116
        %v1118 = vpop.xlane.xlu0 %1117
        %v1119 = vsub.f32 %v1113, %v1118
        %v1120 = vmul.f32 %v1119, 1.442695
        %v1121 = vpow.pop %v1120
        %v1122 = vsel %vm599, %v1121, 0.0
        %1123 = vadd.xlane.f32.xlu0 %v1122
        %v1124 = vpop.xlane.xlu0 %1123
        %v1125 = vrcp.pop %v1124
        %v1126 = vmul.f32 %v1121, %v1125
        %1127 = vrot.lane.b32.xlu0 %v511, 84
        %v1128 = vpop.permute.xlu0 %1127
        %1129 = vrot.lane.b32.xlu0 %v516, 84
        %v1130 = vpop.permute.xlu0 %1129
        %v1134 = vsel %vm599, %v1126, 0
        %1136 = vmatprep.subr.mxu0 0.0
        %1137 = vmatpush1.msra.mxu0 %v1128
        %1138 = vmatprep.subr.mxu0 0.0
        %1139 = vmatpush1.msra.mxu0 %v1130
        %1140 = vmatprep.subr.mxu0 0.0
        %1141 = vmatpush1.msra.mxu0 0.0
        %1142 = vmatprep.subr.mxu0 0.0
        %1143 = vmatpush1.msra.mxu0 0.0
        %1144 = vmatprep.subr.mxu0 0.0
        %1145 = vmatpush1.msra.mxu0 0.0
        %1146 = vmatprep.subr.mxu0 0.0
        %1147 = vmatpush1.msra.mxu0 0.0
        %1148 = vmatprep.subr.mxu0 0.0
        %1149 = vmatpush1.msra.mxu0 0.0
        %1150 = vmatprep.subr.mxu0 0.0
        %1151 = vmatpush1.msra.mxu0 0.0
        %1152 = vmatprep.subr.mxu0 0.0
        %1153 = vmatpush1.msra.mxu0 0.0
        %1154 = vmatprep.subr.mxu0 0.0
        %1155 = vmatpush1.msra.mxu0 0.0
        %1156 = vmatprep.subr.mxu0 0.0
        %1157 = vmatpush1.msra.mxu0 0.0
        %1158 = vmatprep.subr.mxu0 0.0
        %1159 = vmatpush1.msra.mxu0 0.0
        %1160 = vmatprep.subr.mxu0 0.0
        %1161 = vmatpush1.msra.mxu0 0.0
        %1162 = vmatprep.subr.mxu0 0.0
        %1163 = vmatpush1.msra.mxu0 0.0
        %1164 = vmatprep.subr.mxu0 0.0
        %1165 = vmatpush1.msra.mxu0 0.0
        %1166 = vmatprep.subr.mxu0 0.0
        %1167 = vmatpush1.msra.mxu0 0.0
        %1168 = vmatprep.subr.mxu0 0.0
        %1169 = vmatpush1.msra.mxu0 0.0
        %1170 = vmatprep.subr.mxu0 0.0
        %1171 = vmatpush1.msra.mxu0 0.0
        %1172 = vmatprep.subr.mxu0 0.0
        %1173 = vmatpush1.msra.mxu0 0.0
        %1174 = vmatprep.subr.mxu0 0.0
        %1175 = vmatpush1.msra.mxu0 0.0
        %1176 = vmatprep.subr.mxu0 0.0
        %1177 = vmatpush1.msra.mxu0 0.0
        %1178 = vmatprep.subr.mxu0 0.0
        %1179 = vmatpush1.msra.mxu0 0.0
        %1180 = vmatprep.subr.mxu0 0.0
        %1181 = vmatpush1.msra.mxu0 0.0
        %1182 = vmatprep.subr.mxu0 0.0
        %1183 = vmatpush1.msra.mxu0 0.0
        %1184 = vmatprep.subr.mxu0 0.0
        %1185 = vmatpush1.msra.mxu0 0.0
        %1186 = vmatprep.subr.mxu0 0.0
        %1187 = vmatpush1.msra.mxu0 0.0
        %1188 = vmatprep.subr.mxu0 0.0
        %1189 = vmatpush1.msra.mxu0 0.0
        %1190 = vmatprep.subr.mxu0 0.0
        %1191 = vmatpush1.msra.mxu0 0.0
        %1192 = vmatprep.subr.mxu0 0.0
        %1193 = vmatpush1.msra.mxu0 0.0
        %1194 = vmatprep.subr.mxu0 0.0
        %1195 = vmatpush1.msra.mxu0 0.0
        %1196 = vmatprep.subr.mxu0 0.0
        %1197 = vmatpush1.msra.mxu0 0.0
        %1198 = vmatprep.subr.mxu0 0.0
        %1199 = vmatpush1.msra.mxu0 0.0
        %1200 = vmatprep.mubr.f32.mxu0 0.0
        %1201 = vmatmul.mubr.f32.gmra.mrb[0].mxu0 %v1134
        %v1202 = vpop.f32.mrb[0].mxu0
        %v1203 = vadd.f32 0.0, %v1202
        %v1204 = vpop.f32.mrb[0].mxu0
        %1205 = vdwg.mxu0
        %1206 = vrot.lane.b32.xlu0 %v426, 112
        %v1207 = vpop.permute.xlu0 %1206
        %1208 = vrot.lane.b32.xlu0 %v511, 112
        %v1209 = vpop.permute.xlu0 %1208
        %1210 = vrot.lane.b32.xlu0 %v516, 112
        %v1211 = vpop.permute.xlu0 %1210
        %v1212 = vsel %vm519, %v1207, 0
        %v1214 = vsel %vm519, %v1209, 0
        %v1216 = vsel %vm519, %v1211, 0
        %1218 = vmatprep.subr.mxu0 0.0
        %1219 = vmatpush1.xpose.msra.mxu0 %v1214
        %1220 = vmatprep.subr.mxu0 0.0
        %1221 = vmatpush1.xpose.msra.mxu0 %v1216
        %1222 = vmatprep.subr.mxu0 0.0
        %1223 = vmatpush1.xpose.msra.mxu0 0.0
        %1224 = vmatprep.subr.mxu0 0.0
        %1225 = vmatpush1.xpose.msra.mxu0 0.0
        %1226 = vmatprep.subr.mxu0 0.0
        %1227 = vmatpush1.xpose.msra.mxu0 0.0
        %1228 = vmatprep.subr.mxu0 0.0
        %1229 = vmatpush1.xpose.msra.mxu0 0.0
        %1230 = vmatprep.subr.mxu0 0.0
        %1231 = vmatpush1.xpose.msra.mxu0 0.0
        %1232 = vmatprep.subr.mxu0 0.0
        %1233 = vmatpush1.xpose.msra.mxu0 0.0
        %1234 = vmatprep.subr.mxu0 0.0
        %1235 = vmatpush1.xpose.msra.mxu0 0.0
        %1236 = vmatprep.subr.mxu0 0.0
        %1237 = vmatpush1.xpose.msra.mxu0 0.0
        %1238 = vmatprep.subr.mxu0 0.0
        %1239 = vmatpush1.xpose.msra.mxu0 0.0
        %1240 = vmatprep.subr.mxu0 0.0
        %1241 = vmatpush1.xpose.msra.mxu0 0.0
        %1242 = vmatprep.subr.mxu0 0.0
        %1243 = vmatpush1.xpose.msra.mxu0 0.0
        %1244 = vmatprep.subr.mxu0 0.0
        %1245 = vmatpush1.xpose.msra.mxu0 0.0
        %1246 = vmatprep.subr.mxu0 0.0
        %1247 = vmatpush1.xpose.msra.mxu0 0.0
        %1248 = vmatprep.subr.mxu0 0.0
        %1249 = vmatpush1.xpose.msra.mxu0 0.0
        %1250 = vmatprep.subr.mxu0 0.0
        %1251 = vmatpush1.xpose.msra.mxu0 0.0
        %1252 = vmatprep.subr.mxu0 0.0
        %1253 = vmatpush1.xpose.msra.mxu0 0.0
        %1254 = vmatprep.subr.mxu0 0.0
        %1255 = vmatpush1.xpose.msra.mxu0 0.0
        %1256 = vmatprep.subr.mxu0 0.0
        %1257 = vmatpush1.xpose.msra.mxu0 0.0
        %1258 = vmatprep.subr.mxu0 0.0
        %1259 = vmatpush1.xpose.msra.mxu0 0.0
        %1260 = vmatprep.subr.mxu0 0.0
        %1261 = vmatpush1.xpose.msra.mxu0 0.0
        %1262 = vmatprep.subr.mxu0 0.0
        %1263 = vmatpush1.xpose.msra.mxu0 0.0
        %1264 = vmatprep.subr.mxu0 0.0
        %1265 = vmatpush1.xpose.msra.mxu0 0.0
        %1266 = vmatprep.subr.mxu0 0.0
        %1267 = vmatpush1.xpose.msra.mxu0 0.0
        %1268 = vmatprep.subr.mxu0 0.0
        %1269 = vmatpush1.xpose.msra.mxu0 0.0
        %1270 = vmatprep.subr.mxu0 0.0
        %1271 = vmatpush1.xpose.msra.mxu0 0.0
        %1272 = vmatprep.subr.mxu0 0.0
        %1273 = vmatpush1.xpose.msra.mxu0 0.0
        %1274 = vmatprep.subr.mxu0 0.0
        %1275 = vmatpush1.xpose.msra.mxu0 0.0
        %1276 = vmatprep.subr.mxu0 0.0
        %1277 = vmatpush1.xpose.msra.mxu0 0.0
        %1278 = vmatprep.subr.mxu0 0.0
        %1279 = vmatpush1.xpose.msra.mxu0 0.0
        %1280 = vmatprep.subr.mxu0 0.0
        %1281 = vmatpush1.xpose.msra.mxu0 0.0
        %1282 = vmatprep.mubr.f32.mxu0 0.0
        %1283 = vmatmul.mubr.f32.gmra.mrb[0].mxu0 %v1212
        %v1284 = vpop.f32.mrb[0].mxu0
        %v1285 = vadd.f32 0.0, %v1284
        %v1286 = vpop.f32.mrb[0].mxu0
        %1287 = vdwg.mxu0
        %v1288 = vsel %vm599, %v1285, -inf
        %1289 = vmax.xlane.f32.xlu0 %v1288
        %v1290 = vpop.xlane.xlu0 %1289
        %v1291 = vsub.f32 %v1285, %v1290
        %v1292 = vmul.f32 %v1291, 1.442695
        %v1293 = vpow.pop %v1292
        %v1294 = vsel %vm599, %v1293, 0.0
        %1295 = vadd.xlane.f32.xlu0 %v1294
        %v1296 = vpop.xlane.xlu0 %1295
        %v1297 = vrcp.pop %v1296
        %v1298 = vmul.f32 %v1293, %v1297
        %1299 = vrot.lane.b32.xlu0 %v511, 80
        %v1300 = vpop.permute.xlu0 %1299
        %1301 = vrot.lane.b32.xlu0 %v516, 80
        %v1302 = vpop.permute.xlu0 %1301
        %v1306 = vsel %vm599, %v1298, 0
        %1308 = vmatprep.subr.mxu0 0.0
        %1309 = vmatpush1.msra.mxu0 %v1300
        %1310 = vmatprep.subr.mxu0 0.0
        %1311 = vmatpush1.msra.mxu0 %v1302
        %1312 = vmatprep.subr.mxu0 0.0
        %1313 = vmatpush1.msra.mxu0 0.0
        %1314 = vmatprep.subr.mxu0 0.0
        %1315 = vmatpush1.msra.mxu0 0.0
        %1316 = vmatprep.subr.mxu0 0.0
        %1317 = vmatpush1.msra.mxu0 0.0
        %1318 = vmatprep.subr.mxu0 0.0
        %1319 = vmatpush1.msra.mxu0 0.0
        %1320 = vmatprep.subr.mxu0 0.0
        %1321 = vmatpush1.msra.mxu0 0.0
        %1322 = vmatprep.subr.mxu0 0.0
        %1323 = vmatpush1.msra.mxu0 0.0
        %1324 = vmatprep.subr.mxu0 0.0
        %1325 = vmatpush1.msra.mxu0 0.0
        %1326 = vmatprep.subr.mxu0 0.0
        %1327 = vmatpush1.msra.mxu0 0.0
        %1328 = vmatprep.subr.mxu0 0.0
        %1329 = vmatpush1.msra.mxu0 0.0
        %1330 = vmatprep.subr.mxu0 0.0
        %1331 = vmatpush1.msra.mxu0 0.0
        %1332 = vmatprep.subr.mxu0 0.0
        %1333 = vmatpush1.msra.mxu0 0.0
        %1334 = vmatprep.subr.mxu0 0.0
        %1335 = vmatpush1.msra.mxu0 0.0
        %1336 = vmatprep.subr.mxu0 0.0
        %1337 = vmatpush1.msra.mxu0 0.0
        %1338 = vmatprep.subr.mxu0 0.0
        %1339 = vmatpush1.msra.mxu0 0.0
        %1340 = vmatprep.subr.mxu0 0.0
        %1341 = vmatpush1.msra.mxu0 0.0
        %1342 = vmatprep.subr.mxu0 0.0
        %1343 = vmatpush1.msra.mxu0 0.0
        %1344 = vmatprep.subr.mxu0 0.0
        %1345 = vmatpush1.msra.mxu0 0.0
        %1346 = vmatprep.subr.mxu0 0.0
        %1347 = vmatpush1.msra.mxu0 0.0
        %1348 = vmatprep.subr.mxu0 0.0
        %1349 = vmatpush1.msra.mxu0 0.0
        %1350 = vmatprep.subr.mxu0 0.0
        %1351 = vmatpush1.msra.mxu0 0.0
        %1352 = vmatprep.subr.mxu0 0.0
        %1353 = vmatpush1.msra.mxu0 0.0
        %1354 = vmatprep.subr.mxu0 0.0
        %1355 = vmatpush1.msra.mxu0 0.0
        %1356 = vmatprep.subr.mxu0 0.0
        %1357 = vmatpush1.msra.mxu0 0.0
        %1358 = vmatprep.subr.mxu0 0.0
        %1359 = vmatpush1.msra.mxu0 0.0
        %1360 = vmatprep.subr.mxu0 0.0
        %1361 = vmatpush1.msra.mxu0 0.0
        %1362 = vmatprep.subr.mxu0 0.0
        %1363 = vmatpush1.msra.mxu0 0.0
        %1364 = vmatprep.subr.mxu0 0.0
        %1365 = vmatpush1.msra.mxu0 0.0
        %1366 = vmatprep.subr.mxu0 0.0
        %1367 = vmatpush1.msra.mxu0 0.0
        %1368 = vmatprep.subr.mxu0 0.0
        %1369 = vmatpush1.msra.mxu0 0.0
        %1370 = vmatprep.subr.mxu0 0.0
        %1371 = vmatpush1.msra.mxu0 0.0
        %1372 = vmatprep.mubr.f32.mxu0 0.0
        %1373 = vmatmul.mubr.f32.gmra.mrb[0].mxu0 %v1306
        %v1374 = vpop.f32.mrb[0].mxu0
        %v1375 = vadd.f32 0.0, %v1374
        %v1376 = vpop.f32.mrb[0].mxu0
        %1377 = vdwg.mxu0
        %1378 = vrot.lane.b32.xlu0 %v426, 108
        %v1379 = vpop.permute.xlu0 %1378
        %1380 = vrot.lane.b32.xlu0 %v511, 108
        %v1381 = vpop.permute.xlu0 %1380
        %1382 = vrot.lane.b32.xlu0 %v516, 108
        %v1383 = vpop.permute.xlu0 %1382
        %v1384 = vsel %vm519, %v1379, 0
        %v1386 = vsel %vm519, %v1381, 0
        %v1388 = vsel %vm519, %v1383, 0
        %1390 = vmatprep.subr.mxu0 0.0
        %1391 = vmatpush1.xpose.msra.mxu0 %v1386
        %1392 = vmatprep.subr.mxu0 0.0
        %1393 = vmatpush1.xpose.msra.mxu0 %v1388
        %1394 = vmatprep.subr.mxu0 0.0
        %1395 = vmatpush1.xpose.msra.mxu0 0.0
        %1396 = vmatprep.subr.mxu0 0.0
        %1397 = vmatpush1.xpose.msra.mxu0 0.0
        %1398 = vmatprep.subr.mxu0 0.0
        %1399 = vmatpush1.xpose.msra.mxu0 0.0
        %1400 = vmatprep.subr.mxu0 0.0
        %1401 = vmatpush1.xpose.msra.mxu0 0.0
        %1402 = vmatprep.subr.mxu0 0.0
        %1403 = vmatpush1.xpose.msra.mxu0 0.0
        %1404 = vmatprep.subr.mxu0 0.0
        %1405 = vmatpush1.xpose.msra.mxu0 0.0
        %1406 = vmatprep.subr.mxu0 0.0
        %1407 = vmatpush1.xpose.msra.mxu0 0.0
        %1408 = vmatprep.subr.mxu0 0.0
        %1409 = vmatpush1.xpose.msra.mxu0 0.0
        %1410 = vmatprep.subr.mxu0 0.0
        %1411 = vmatpush1.xpose.msra.mxu0 0.0
        %1412 = vmatprep.subr.mxu0 0.0
        %1413 = vmatpush1.xpose.msra.mxu0 0.0
        %1414 = vmatprep.subr.mxu0 0.0
        %1415 = vmatpush1.xpose.msra.mxu0 0.0
        %1416 = vmatprep.subr.mxu0 0.0
        %1417 = vmatpush1.xpose.msra.mxu0 0.0
        %1418 = vmatprep.subr.mxu0 0.0
        %1419 = vmatpush1.xpose.msra.mxu0 0.0
        %1420 = vmatprep.subr.mxu0 0.0
        %1421 = vmatpush1.xpose.msra.mxu0 0.0
        %1422 = vmatprep.subr.mxu0 0.0
        %1423 = vmatpush1.xpose.msra.mxu0 0.0
        %1424 = vmatprep.subr.mxu0 0.0
        %1425 = vmatpush1.xpose.msra.mxu0 0.0
        %1426 = vmatprep.subr.mxu0 0.0
        %1427 = vmatpush1.xpose.msra.mxu0 0.0
        %1428 = vmatprep.subr.mxu0 0.0
        %1429 = vmatpush1.xpose.msra.mxu0 0.0
        %1430 = vmatprep.subr.mxu0 0.0
        %1431 = vmatpush1.xpose.msra.mxu0 0.0
        %1432 = vmatprep.subr.mxu0 0.0
        %1433 = vmatpush1.xpose.msra.mxu0 0.0
        %1434 = vmatprep.subr.mxu0 0.0
        %1435 = vmatpush1.xpose.msra.mxu0 0.0
        %1436 = vmatprep.subr.mxu0 0.0
        %1437 = vmatpush1.xpose.msra.mxu0 0.0
        %1438 = vmatprep.subr.mxu0 0.0
        %1439 = vmatpush1.xpose.msra.mxu0 0.0
        %1440 = vmatprep.subr.mxu0 0.0
        %1441 = vmatpush1.xpose.msra.mxu0 0.0
        %1442 = vmatprep.subr.mxu0 0.0
        %1443 = vmatpush1.xpose.msra.mxu0 0.0
        %1444 = vmatprep.subr.mxu0 0.0
        %1445 = vmatpush1.xpose.msra.mxu0 0.0
        %1446 = vmatprep.subr.mxu0 0.0
        %1447 = vmatpush1.xpose.msra.mxu0 0.0
        %1448 = vmatprep.subr.mxu0 0.0
        %1449 = vmatpush1.xpose.msra.mxu0 0.0
        %1450 = vmatprep.subr.mxu0 0.0
        %1451 = vmatpush1.xpose.msra.mxu0 0.0
        %1452 = vmatprep.subr.mxu0 0.0
        %1453 = vmatpush1.xpose.msra.mxu0 0.0
        %1454 = vmatprep.mubr.f32.mxu0 0.0
        %1455 = vmatmul.mubr.f32.gmra.mrb[0].mxu0 %v1384
        %v1456 = vpop.f32.mrb[0].mxu0
        %v1457 = vadd.f32 0.0, %v1456
        %v1458 = vpop.f32.mrb[0].mxu0
        %1459 = vdwg.mxu0
        %v1460 = vsel %vm599, %v1457, -inf
        %1461 = vmax.xlane.f32.xlu0 %v1460
        %v1462 = vpop.xlane.xlu0 %1461
        %v1463 = vsub.f32 %v1457, %v1462
        %v1464 = vmul.f32 %v1463, 1.442695
        %v1465 = vpow.pop %v1464
        %v1466 = vsel %vm599, %v1465, 0.0
        %1467 = vadd.xlane.f32.xlu0 %v1466
        %v1468 = vpop.xlane.xlu0 %1467
        %v1469 = vrcp.pop %v1468
        %v1470 = vmul.f32 %v1465, %v1469
        %1471 = vrot.lane.b32.xlu0 %v511, 76
        %v1472 = vpop.permute.xlu0 %1471
        %1473 = vrot.lane.b32.xlu0 %v516, 76
        %v1474 = vpop.permute.xlu0 %1473
        %v1478 = vsel %vm599, %v1470, 0
        %1480 = vmatprep.subr.mxu0 0.0
        %1481 = vmatpush1.msra.mxu0 %v1472
        %1482 = vmatprep.subr.mxu0 0.0
        %1483 = vmatpush1.msra.mxu0 %v1474
        %1484 = vmatprep.subr.mxu0 0.0
        %1485 = vmatpush1.msra.mxu0 0.0
        %1486 = vmatprep.subr.mxu0 0.0
        %1487 = vmatpush1.msra.mxu0 0.0
        %1488 = vmatprep.subr.mxu0 0.0
        %1489 = vmatpush1.msra.mxu0 0.0
        %1490 = vmatprep.subr.mxu0 0.0
        %1491 = vmatpush1.msra.mxu0 0.0
        %1492 = vmatprep.subr.mxu0 0.0
        %1493 = vmatpush1.msra.mxu0 0.0
        %1494 = vmatprep.subr.mxu0 0.0
        %1495 = vmatpush1.msra.mxu0 0.0
        %1496 = vmatprep.subr.mxu0 0.0
        %1497 = vmatpush1.msra.mxu0 0.0
        %1498 = vmatprep.subr.mxu0 0.0
        %1499 = vmatpush1.msra.mxu0 0.0
        %1500 = vmatprep.subr.mxu0 0.0
        %1501 = vmatpush1.msra.mxu0 0.0
        %1502 = vmatprep.subr.mxu0 0.0
        %1503 = vmatpush1.msra.mxu0 0.0
        %1504 = vmatprep.subr.mxu0 0.0
        %1505 = vmatpush1.msra.mxu0 0.0
        %1506 = vmatprep.subr.mxu0 0.0
        %1507 = vmatpush1.msra.mxu0 0.0
        %1508 = vmatprep.subr.mxu0 0.0
        %1509 = vmatpush1.msra.mxu0 0.0
        %1510 = vmatprep.subr.mxu0 0.0
        %1511 = vmatpush1.msra.mxu0 0.0
        %1512 = vmatprep.subr.mxu0 0.0
        %1513 = vmatpush1.msra.mxu0 0.0
        %1514 = vmatprep.subr.mxu0 0.0
        %1515 = vmatpush1.msra.mxu0 0.0
        %1516 = vmatprep.subr.mxu0 0.0
        %1517 = vmatpush1.msra.mxu0 0.0
        %1518 = vmatprep.subr.mxu0 0.0
        %1519 = vmatpush1.msra.mxu0 0.0
        %1520 = vmatprep.subr.mxu0 0.0
        %1521 = vmatpush1.msra.mxu0 0.0
        %1522 = vmatprep.subr.mxu0 0.0
        %1523 = vmatpush1.msra.mxu0 0.0
        %1524 = vmatprep.subr.mxu0 0.0
        %1525 = vmatpush1.msra.mxu0 0.0
        %1526 = vmatprep.subr.mxu0 0.0
        %1527 = vmatpush1.msra.mxu0 0.0
        %1528 = vmatprep.subr.mxu0 0.0
        %1529 = vmatpush1.msra.mxu0 0.0
        %1530 = vmatprep.subr.mxu0 0.0
        %1531 = vmatpush1.msra.mxu0 0.0
        %1532 = vmatprep.subr.mxu0 0.0
        %1533 = vmatpush1.msra.mxu0 0.0
        %1534 = vmatprep.subr.mxu0 0.0
        %1535 = vmatpush1.msra.mxu0 0.0
        %1536 = vmatprep.subr.mxu0 0.0
        %1537 = vmatpush1.msra.mxu0 0.0
        %1538 = vmatprep.subr.mxu0 0.0
        %1539 = vmatpush1.msra.mxu0 0.0
        %1540 = vmatprep.subr.mxu0 0.0
        %1541 = vmatpush1.msra.mxu0 0.0
        %1542 = vmatprep.subr.mxu0 0.0
        %1543 = vmatpush1.msra.mxu0 0.0
        %1544 = vmatprep.mubr.f32.mxu0 0.0
        %1545 = vmatmul.mubr.f32.gmra.mrb[0].mxu0 %v1478
        %v1546 = vpop.f32.mrb[0].mxu0
        %v1547 = vadd.f32 0.0, %v1546
        %v1548 = vpop.f32.mrb[0].mxu0
        %1549 = vdwg.mxu0
        %1550 = vrot.lane.b32.xlu0 %v426, 104
        %v1551 = vpop.permute.xlu0 %1550
        %1552 = vrot.lane.b32.xlu0 %v511, 104
        %v1553 = vpop.permute.xlu0 %1552
        %1554 = vrot.lane.b32.xlu0 %v516, 104
        %v1555 = vpop.permute.xlu0 %1554
        %v1556 = vsel %vm519, %v1551, 0
        %v1558 = vsel %vm519, %v1553, 0
        %v1560 = vsel %vm519, %v1555, 0
        %1562 = vmatprep.subr.mxu0 0.0
        %1563 = vmatpush1.xpose.msra.mxu0 %v1558
        %1564 = vmatprep.subr.mxu0 0.0
        %1565 = vmatpush1.xpose.msra.mxu0 %v1560
        %1566 = vmatprep.subr.mxu0 0.0
        %1567 = vmatpush1.xpose.msra.mxu0 0.0
        %1568 = vmatprep.subr.mxu0 0.0
        %1569 = vmatpush1.xpose.msra.mxu0 0.0
        %1570 = vmatprep.subr.mxu0 0.0
        %1571 = vmatpush1.xpose.msra.mxu0 0.0
        %1572 = vmatprep.subr.mxu0 0.0
        %1573 = vmatpush1.xpose.msra.mxu0 0.0
        %1574 = vmatprep.subr.mxu0 0.0
        %1575 = vmatpush1.xpose.msra.mxu0 0.0
        %1576 = vmatprep.subr.mxu0 0.0
        %1577 = vmatpush1.xpose.msra.mxu0 0.0
        %1578 = vmatprep.subr.mxu0 0.0
        %1579 = vmatpush1.xpose.msra.mxu0 0.0
        %1580 = vmatprep.subr.mxu0 0.0
        %1581 = vmatpush1.xpose.msra.mxu0 0.0
        %1582 = vmatprep.subr.mxu0 0.0
        %1583 = vmatpush1.xpose.msra.mxu0 0.0
        %1584 = vmatprep.subr.mxu0 0.0
        %1585 = vmatpush1.xpose.msra.mxu0 0.0
        %1586 = vmatprep.subr.mxu0 0.0
        %1587 = vmatpush1.xpose.msra.mxu0 0.0
        %1588 = vmatprep.subr.mxu0 0.0
        %1589 = vmatpush1.xpose.msra.mxu0 0.0
        %1590 = vmatprep.subr.mxu0 0.0
        %1591 = vmatpush1.xpose.msra.mxu0 0.0
        %1592 = vmatprep.subr.mxu0 0.0
        %1593 = vmatpush1.xpose.msra.mxu0 0.0
        %1594 = vmatprep.subr.mxu0 0.0
        %1595 = vmatpush1.xpose.msra.mxu0 0.0
        %1596 = vmatprep.subr.mxu0 0.0
        %1597 = vmatpush1.xpose.msra.mxu0 0.0
        %1598 = vmatprep.subr.mxu0 0.0
        %1599 = vmatpush1.xpose.msra.mxu0 0.0
        %1600 = vmatprep.subr.mxu0 0.0
        %1601 = vmatpush1.xpose.msra.mxu0 0.0
        %1602 = vmatprep.subr.mxu0 0.0
        %1603 = vmatpush1.xpose.msra.mxu0 0.0
        %1604 = vmatprep.subr.mxu0 0.0
        %1605 = vmatpush1.xpose.msra.mxu0 0.0
        %1606 = vmatprep.subr.mxu0 0.0
        %1607 = vmatpush1.xpose.msra.mxu0 0.0
        %1608 = vmatprep.subr.mxu0 0.0
        %1609 = vmatpush1.xpose.msra.mxu0 0.0
        %1610 = vmatprep.subr.mxu0 0.0
        %1611 = vmatpush1.xpose.msra.mxu0 0.0
        %1612 = vmatprep.subr.mxu0 0.0
        %1613 = vmatpush1.xpose.msra.mxu0 0.0
        %1614 = vmatprep.subr.mxu0 0.0
        %1615 = vmatpush1.xpose.msra.mxu0 0.0
        %1616 = vmatprep.subr.mxu0 0.0
        %1617 = vmatpush1.xpose.msra.mxu0 0.0
        %1618 = vmatprep.subr.mxu0 0.0
        %1619 = vmatpush1.xpose.msra.mxu0 0.0
        %1620 = vmatprep.subr.mxu0 0.0
        %1621 = vmatpush1.xpose.msra.mxu0 0.0
        %1622 = vmatprep.subr.mxu0 0.0
        %1623 = vmatpush1.xpose.msra.mxu0 0.0
        %1624 = vmatprep.subr.mxu0 0.0
        %1625 = vmatpush1.xpose.msra.mxu0 0.0
        %1626 = vmatprep.mubr.f32.mxu0 0.0
        %1627 = vmatmul.mubr.f32.gmra.mrb[0].mxu0 %v1556
        %v1628 = vpop.f32.mrb[0].mxu0
        %v1629 = vadd.f32 0.0, %v1628
        %v1630 = vpop.f32.mrb[0].mxu0
        %1631 = vdwg.mxu0
        %v1632 = vsel %vm599, %v1629, -inf
        %1633 = vmax.xlane.f32.xlu0 %v1632
        %v1634 = vpop.xlane.xlu0 %1633
        %v1635 = vsub.f32 %v1629, %v1634
        %v1636 = vmul.f32 %v1635, 1.442695
        %v1637 = vpow.pop %v1636
        %v1638 = vsel %vm599, %v1637, 0.0
        %1639 = vadd.xlane.f32.xlu0 %v1638
        %v1640 = vpop.xlane.xlu0 %1639
        %v1641 = vrcp.pop %v1640
        %v1642 = vmul.f32 %v1637, %v1641
        %1643 = vrot.lane.b32.xlu0 %v511, 72
        %v1644 = vpop.permute.xlu0 %1643
        %1645 = vrot.lane.b32.xlu0 %v516, 72
        %v1646 = vpop.permute.xlu0 %1645
        %v1650 = vsel %vm599, %v1642, 0
        %1652 = vmatprep.subr.mxu0 0.0
        %1653 = vmatpush1.msra.mxu0 %v1644
        %1654 = vmatprep.subr.mxu0 0.0
        %1655 = vmatpush1.msra.mxu0 %v1646
        %1656 = vmatprep.subr.mxu0 0.0
        %1657 = vmatpush1.msra.mxu0 0.0
        %1658 = vmatprep.subr.mxu0 0.0
        %1659 = vmatpush1.msra.mxu0 0.0
        %1660 = vmatprep.subr.mxu0 0.0
        %1661 = vmatpush1.msra.mxu0 0.0
        %1662 = vmatprep.subr.mxu0 0.0
        %1663 = vmatpush1.msra.mxu0 0.0
        %1664 = vmatprep.subr.mxu0 0.0
        %1665 = vmatpush1.msra.mxu0 0.0
        %1666 = vmatprep.subr.mxu0 0.0
        %1667 = vmatpush1.msra.mxu0 0.0
        %1668 = vmatprep.subr.mxu0 0.0
        %1669 = vmatpush1.msra.mxu0 0.0
        %1670 = vmatprep.subr.mxu0 0.0
        %1671 = vmatpush1.msra.mxu0 0.0
        %1672 = vmatprep.subr.mxu0 0.0
        %1673 = vmatpush1.msra.mxu0 0.0
        %1674 = vmatprep.subr.mxu0 0.0
        %1675 = vmatpush1.msra.mxu0 0.0
        %1676 = vmatprep.subr.mxu0 0.0
        %1677 = vmatpush1.msra.mxu0 0.0
        %1678 = vmatprep.subr.mxu0 0.0
        %1679 = vmatpush1.msra.mxu0 0.0
        %1680 = vmatprep.subr.mxu0 0.0
        %1681 = vmatpush1.msra.mxu0 0.0
        %1682 = vmatprep.subr.mxu0 0.0
        %1683 = vmatpush1.msra.mxu0 0.0
        %1684 = vmatprep.subr.mxu0 0.0
        %1685 = vmatpush1.msra.mxu0 0.0
        %1686 = vmatprep.subr.mxu0 0.0
        %1687 = vmatpush1.msra.mxu0 0.0
        %1688 = vmatprep.subr.mxu0 0.0
        %1689 = vmatpush1.msra.mxu0 0.0
        %1690 = vmatprep.subr.mxu0 0.0
        %1691 = vmatpush1.msra.mxu0 0.0
        %1692 = vmatprep.subr.mxu0 0.0
        %1693 = vmatpush1.msra.mxu0 0.0
        %1694 = vmatprep.subr.mxu0 0.0
        %1695 = vmatpush1.msra.mxu0 0.0
        %1696 = vmatprep.subr.mxu0 0.0
        %1697 = vmatpush1.msra.mxu0 0.0
        %1698 = vmatprep.subr.mxu0 0.0
        %1699 = vmatpush1.msra.mxu0 0.0
        %1700 = vmatprep.subr.mxu0 0.0
        %1701 = vmatpush1.msra.mxu0 0.0
        %1702 = vmatprep.subr.mxu0 0.0
        %1703 = vmatpush1.msra.mxu0 0.0
        %1704 = vmatprep.subr.mxu0 0.0
        %1705 = vmatpush1.msra.mxu0 0.0
        %1706 = vmatprep.subr.mxu0 0.0
        %1707 = vmatpush1.msra.mxu0 0.0
        %1708 = vmatprep.subr.mxu0 0.0
        %1709 = vmatpush1.msra.mxu0 0.0
        %1710 = vmatprep.subr.mxu0 0.0
        %1711 = vmatpush1.msra.mxu0 0.0
        %1712 = vmatprep.subr.mxu0 0.0
        %1713 = vmatpush1.msra.mxu0 0.0
        %1714 = vmatprep.subr.mxu0 0.0
        %1715 = vmatpush1.msra.mxu0 0.0
        %1716 = vmatprep.mubr.f32.mxu0 0.0
        %1717 = vmatmul.mubr.f32.gmra.mrb[0].mxu0 %v1650
        %v1718 = vpop.f32.mrb[0].mxu0
        %v1719 = vadd.f32 0.0, %v1718
        %v1720 = vpop.f32.mrb[0].mxu0
        %1721 = vdwg.mxu0
        %1722 = vrot.lane.b32.xlu0 %v426, 100
        %v1723 = vpop.permute.xlu0 %1722
        %1724 = vrot.lane.b32.xlu0 %v511, 100
        %v1725 = vpop.permute.xlu0 %1724
        %1726 = vrot.lane.b32.xlu0 %v516, 100
        %v1727 = vpop.permute.xlu0 %1726
        %v1728 = vsel %vm519, %v1723, 0
        %v1730 = vsel %vm519, %v1725, 0
        %v1732 = vsel %vm519, %v1727, 0
        %1734 = vmatprep.subr.mxu0 0.0
        %1735 = vmatpush1.xpose.msra.mxu0 %v1730
        %1736 = vmatprep.subr.mxu0 0.0
        %1737 = vmatpush1.xpose.msra.mxu0 %v1732
        %1738 = vmatprep.subr.mxu0 0.0
        %1739 = vmatpush1.xpose.msra.mxu0 0.0
        %1740 = vmatprep.subr.mxu0 0.0
        %1741 = vmatpush1.xpose.msra.mxu0 0.0
        %1742 = vmatprep.subr.mxu0 0.0
        %1743 = vmatpush1.xpose.msra.mxu0 0.0
        %1744 = vmatprep.subr.mxu0 0.0
        %1745 = vmatpush1.xpose.msra.mxu0 0.0
        %1746 = vmatprep.subr.mxu0 0.0
        %1747 = vmatpush1.xpose.msra.mxu0 0.0
        %1748 = vmatprep.subr.mxu0 0.0
        %1749 = vmatpush1.xpose.msra.mxu0 0.0
        %1750 = vmatprep.subr.mxu0 0.0
        %1751 = vmatpush1.xpose.msra.mxu0 0.0
        %1752 = vmatprep.subr.mxu0 0.0
        %1753 = vmatpush1.xpose.msra.mxu0 0.0
        %1754 = vmatprep.subr.mxu0 0.0
        %1755 = vmatpush1.xpose.msra.mxu0 0.0
        %1756 = vmatprep.subr.mxu0 0.0
        %1757 = vmatpush1.xpose.msra.mxu0 0.0
        %1758 = vmatprep.subr.mxu0 0.0
        %1759 = vmatpush1.xpose.msra.mxu0 0.0
        %1760 = vmatprep.subr.mxu0 0.0
        %1761 = vmatpush1.xpose.msra.mxu0 0.0
        %1762 = vmatprep.subr.mxu0 0.0
        %1763 = vmatpush1.xpose.msra.mxu0 0.0
        %1764 = vmatprep.subr.mxu0 0.0
        %1765 = vmatpush1.xpose.msra.mxu0 0.0
        %1766 = vmatprep.subr.mxu0 0.0
        %1767 = vmatpush1.xpose.msra.mxu0 0.0
        %1768 = vmatprep.subr.mxu0 0.0
        %1769 = vmatpush1.xpose.msra.mxu0 0.0
        %1770 = vmatprep.subr.mxu0 0.0
        %1771 = vmatpush1.xpose.msra.mxu0 0.0
        %1772 = vmatprep.subr.mxu0 0.0
        %1773 = vmatpush1.xpose.msra.mxu0 0.0
        %1774 = vmatprep.subr.mxu0 0.0
        %1775 = vmatpush1.xpose.msra.mxu0 0.0
        %1776 = vmatprep.subr.mxu0 0.0
        %1777 = vmatpush1.xpose.msra.mxu0 0.0
        %1778 = vmatprep.subr.mxu0 0.0
        %1779 = vmatpush1.xpose.msra.mxu0 0.0
        %1780 = vmatprep.subr.mxu0 0.0
        %1781 = vmatpush1.xpose.msra.mxu0 0.0
        %1782 = vmatprep.subr.mxu0 0.0
        %1783 = vmatpush1.xpose.msra.mxu0 0.0
        %1784 = vmatprep.subr.mxu0 0.0
        %1785 = vmatpush1.xpose.msra.mxu0 0.0
        %1786 = vmatprep.subr.mxu0 0.0
        %1787 = vmatpush1.xpose.msra.mxu0 0.0
        %1788 = vmatprep.subr.mxu0 0.0
        %1789 = vmatpush1.xpose.msra.mxu0 0.0
        %1790 = vmatprep.subr.mxu0 0.0
        %1791 = vmatpush1.xpose.msra.mxu0 0.0
        %1792 = vmatprep.subr.mxu0 0.0
        %1793 = vmatpush1.xpose.msra.mxu0 0.0
        %1794 = vmatprep.subr.mxu0 0.0
        %1795 = vmatpush1.xpose.msra.mxu0 0.0
        %1796 = vmatprep.subr.mxu0 0.0
        %1797 = vmatpush1.xpose.msra.mxu0 0.0
        %1798 = vmatprep.mubr.f32.mxu0 0.0
        %1799 = vmatmul.mubr.f32.gmra.mrb[0].mxu0 %v1728
        %v1800 = vpop.f32.mrb[0].mxu0
        %v1801 = vadd.f32 0.0, %v1800
        %v1802 = vpop.f32.mrb[0].mxu0
        %1803 = vdwg.mxu0
        %v1804 = vsel %vm599, %v1801, -inf
        %1805 = vmax.xlane.f32.xlu0 %v1804
        %v1806 = vpop.xlane.xlu0 %1805
        %v1807 = vsub.f32 %v1801, %v1806
        %v1808 = vmul.f32 %v1807, 1.442695
        %v1809 = vpow.pop %v1808
        %v1810 = vsel %vm599, %v1809, 0.0
        %1811 = vadd.xlane.f32.xlu0 %v1810
        %v1812 = vpop.xlane.xlu0 %1811
        %v1813 = vrcp.pop %v1812
        %v1814 = vmul.f32 %v1809, %v1813
        %1815 = vrot.lane.b32.xlu0 %v511, 68
        %v1816 = vpop.permute.xlu0 %1815
        %1817 = vrot.lane.b32.xlu0 %v516, 68
        %v1818 = vpop.permute.xlu0 %1817
        %v1822 = vsel %vm599, %v1814, 0
        %1824 = vmatprep.subr.mxu0 0.0
        %1825 = vmatpush1.msra.mxu0 %v1816
        %1826 = vmatprep.subr.mxu0 0.0
        %1827 = vmatpush1.msra.mxu0 %v1818
        %1828 = vmatprep.subr.mxu0 0.0
        %1829 = vmatpush1.msra.mxu0 0.0
        %1830 = vmatprep.subr.mxu0 0.0
        %1831 = vmatpush1.msra.mxu0 0.0
        %1832 = vmatprep.subr.mxu0 0.0
        %1833 = vmatpush1.msra.mxu0 0.0
        %1834 = vmatprep.subr.mxu0 0.0
        %1835 = vmatpush1.msra.mxu0 0.0
        %1836 = vmatprep.subr.mxu0 0.0
        %1837 = vmatpush1.msra.mxu0 0.0
        %1838 = vmatprep.subr.mxu0 0.0
        %1839 = vmatpush1.msra.mxu0 0.0
        %1840 = vmatprep.subr.mxu0 0.0
        %1841 = vmatpush1.msra.mxu0 0.0
        %1842 = vmatprep.subr.mxu0 0.0
        %1843 = vmatpush1.msra.mxu0 0.0
        %1844 = vmatprep.subr.mxu0 0.0
        %1845 = vmatpush1.msra.mxu0 0.0
        %1846 = vmatprep.subr.mxu0 0.0
        %1847 = vmatpush1.msra.mxu0 0.0
        %1848 = vmatprep.subr.mxu0 0.0
        %1849 = vmatpush1.msra.mxu0 0.0
        %1850 = vmatprep.subr.mxu0 0.0
        %1851 = vmatpush1.msra.mxu0 0.0
        %1852 = vmatprep.subr.mxu0 0.0
        %1853 = vmatpush1.msra.mxu0 0.0
        %1854 = vmatprep.subr.mxu0 0.0
        %1855 = vmatpush1.msra.mxu0 0.0
        %1856 = vmatprep.subr.mxu0 0.0
        %1857 = vmatpush1.msra.mxu0 0.0
        %1858 = vmatprep.subr.mxu0 0.0
        %1859 = vmatpush1.msra.mxu0 0.0
        %1860 = vmatprep.subr.mxu0 0.0
        %1861 = vmatpush1.msra.mxu0 0.0
        %1862 = vmatprep.subr.mxu0 0.0
        %1863 = vmatpush1.msra.mxu0 0.0
        %1864 = vmatprep.subr.mxu0 0.0
        %1865 = vmatpush1.msra.mxu0 0.0
        %1866 = vmatprep.subr.mxu0 0.0
        %1867 = vmatpush1.msra.mxu0 0.0
        %1868 = vmatprep.subr.mxu0 0.0
        %1869 = vmatpush1.msra.mxu0 0.0
        %1870 = vmatprep.subr.mxu0 0.0
        %1871 = vmatpush1.msra.mxu0 0.0
        %1872 = vmatprep.subr.mxu0 0.0
        %1873 = vmatpush1.msra.mxu0 0.0
        %1874 = vmatprep.subr.mxu0 0.0
        %1875 = vmatpush1.msra.mxu0 0.0
        %1876 = vmatprep.subr.mxu0 0.0
        %1877 = vmatpush1.msra.mxu0 0.0
        %1878 = vmatprep.subr.mxu0 0.0
        %1879 = vmatpush1.msra.mxu0 0.0
        %1880 = vmatprep.subr.mxu0 0.0
        %1881 = vmatpush1.msra.mxu0 0.0
        %1882 = vmatprep.subr.mxu0 0.0
        %1883 = vmatpush1.msra.mxu0 0.0
        %1884 = vmatprep.subr.mxu0 0.0
        %1885 = vmatpush1.msra.mxu0 0.0
        %1886 = vmatprep.subr.mxu0 0.0
        %1887 = vmatpush1.msra.mxu0 0.0
        %1888 = vmatprep.mubr.f32.mxu0 0.0
        %1889 = vmatmul.mubr.f32.gmra.mrb[0].mxu0 %v1822
        %v1890 = vpop.f32.mrb[0].mxu0
        %v1891 = vadd.f32 0.0, %v1890
        %v1892 = vpop.f32.mrb[0].mxu0
        %1893 = vdwg.mxu0
        %1895 = vrot.lane.b32.xlu0 %v859, 4
        %v1896 = vpop.permute.xlu0 %1895
        %1899 = vrot.lane.b32.xlu0 %v1031, 8
        %v1900 = vpop.permute.xlu0 %1899
        %1903 = vrot.lane.b32.xlu0 %v1203, 12
        %v1904 = vpop.permute.xlu0 %1903
        %1907 = vrot.lane.b32.xlu0 %v1375, 16
        %v1908 = vpop.permute.xlu0 %1907
        %1911 = vrot.lane.b32.xlu0 %v1547, 20
        %v1912 = vpop.permute.xlu0 %1911
        %1915 = vrot.lane.b32.xlu0 %v1719, 24
        %v1916 = vpop.permute.xlu0 %1915
        %1919 = vrot.lane.b32.xlu0 %v1891, 28
        %v1920 = vpop.permute.xlu0 %1919
        %v1922 = vsel %vm519, %v687, %v1896
        %vm1923 = vcmask 64512
        %v1924 = vsel %vm1923, %v1922, %v1900
        %vm1925 = vcmask 97280
        %v1926 = vsel %vm1925, %v1924, %v1904
        %v1927 = vsel %vm599, %v1926, %v1908
        %vm1928 = vcmask 162816
        %v1929 = vsel %vm1928, %v1927, %v1912
        %vm1930 = vcmask 195584
        %v1931 = vsel %vm1930, %v1929, %v1916
        %vm1932 = vcmask 228352
        %v1933 = vsel %vm1932, %v1931, %v1920
        %v1934 = vld [vmem:[#allocation10] sm:$0xff]
        %v1935 = vld [vmem:[#allocation10 + $0x8] sm:$0xff]
        %v1936 = vld [vmem:[#allocation10 + $0x10] sm:$0xff]
        %v1937 = vld [vmem:[#allocation10 + $0x18] sm:$0xff]
        %v1938 = vld [vmem:[%s5] sm:$0x1]
        %v1940 = vlaneseq
        %v1941 = vshrl.u32 %v1940, 7
        %v1942 = vsub.s32 0, %v1941
        %v1943 = vrot.slane %v1938, %v1942
        %v1946 = vsel %vm355, %v1933, 0
        %1948 = vmatprep.subr.mxu0 0.0
        %1949 = vmatpush1.msra.mxu0 %v1934
        %1950 = vmatprep.subr.mxu0 0.0
        %1951 = vmatpush1.msra.mxu0 %v1935
        %1952 = vmatprep.subr.mxu0 0.0
        %1953 = vmatpush1.msra.mxu0 %v1936
        %1954 = vmatprep.subr.mxu0 0.0
        %1955 = vmatpush1.msra.mxu0 %v1937
        %1956 = vmatprep.subr.mxu0 0.0
        %1957 = vmatpush1.msra.mxu0 0.0
        %1958 = vmatprep.subr.mxu0 0.0
        %1959 = vmatpush1.msra.mxu0 0.0
        %1960 = vmatprep.subr.mxu0 0.0
        %1961 = vmatpush1.msra.mxu0 0.0
        %1962 = vmatprep.subr.mxu0 0.0
        %1963 = vmatpush1.msra.mxu0 0.0
        %1964 = vmatprep.subr.mxu0 0.0
        %1965 = vmatpush1.msra.mxu0 0.0
        %1966 = vmatprep.subr.mxu0 0.0
        %1967 = vmatpush1.msra.mxu0 0.0
        %1968 = vmatprep.subr.mxu0 0.0
        %1969 = vmatpush1.msra.mxu0 0.0
        %1970 = vmatprep.subr.mxu0 0.0
        %1971 = vmatpush1.msra.mxu0 0.0
        %1972 = vmatprep.subr.mxu0 0.0
        %1973 = vmatpush1.msra.mxu0 0.0
        %1974 = vmatprep.subr.mxu0 0.0
        %1975 = vmatpush1.msra.mxu0 0.0
        %1976 = vmatprep.subr.mxu0 0.0
        %1977 = vmatpush1.msra.mxu0 0.0
        %1978 = vmatprep.subr.mxu0 0.0
        %1979 = vmatpush1.msra.mxu0 0.0
        %1980 = vmatprep.subr.mxu0 0.0
        %1981 = vmatpush1.msra.mxu0 0.0
        %1982 = vmatprep.subr.mxu0 0.0
        %1983 = vmatpush1.msra.mxu0 0.0
        %1984 = vmatprep.subr.mxu0 0.0
        %1985 = vmatpush1.msra.mxu0 0.0
        %1986 = vmatprep.subr.mxu0 0.0
        %1987 = vmatpush1.msra.mxu0 0.0
        %1988 = vmatprep.subr.mxu0 0.0
        %1989 = vmatpush1.msra.mxu0 0.0
        %1990 = vmatprep.subr.mxu0 0.0
        %1991 = vmatpush1.msra.mxu0 0.0
        %1992 = vmatprep.subr.mxu0 0.0
        %1993 = vmatpush1.msra.mxu0 0.0
        %1994 = vmatprep.subr.mxu0 0.0
        %1995 = vmatpush1.msra.mxu0 0.0
        %1996 = vmatprep.subr.mxu0 0.0
        %1997 = vmatpush1.msra.mxu0 0.0
        %1998 = vmatprep.subr.mxu0 0.0
        %1999 = vmatpush1.msra.mxu0 0.0
        %2000 = vmatprep.subr.mxu0 0.0
        %2001 = vmatpush1.msra.mxu0 0.0
        %2002 = vmatprep.subr.mxu0 0.0
        %2003 = vmatpush1.msra.mxu0 0.0
        %2004 = vmatprep.subr.mxu0 0.0
        %2005 = vmatpush1.msra.mxu0 0.0
        %2006 = vmatprep.subr.mxu0 0.0
        %2007 = vmatpush1.msra.mxu0 0.0
        %2008 = vmatprep.subr.mxu0 0.0
        %2009 = vmatpush1.msra.mxu0 0.0
        %2010 = vmatprep.subr.mxu0 0.0
        %2011 = vmatpush1.msra.mxu0 0.0
        %2012 = vmatprep.mubr.f32.mxu0 0.0
        %2013 = vmatmul.mubr.f32.gmra.mrb[0].mxu0 %v1946
        %v2014 = vpop.f32.mrb[0].mxu0
        %v2015 = vadd.f32 %v1943, %v2014
        %v2016 = vpop.f32.mrb[0].mxu0
        %2017 = vdwg.mxu0
        %2018 = vst.msk [vmem:[%s349] sm:$0xff] %vm355, %v2015
        %s2019 = sand.u32 %s171, 1
        %s2020 = scalar_lea.sflag [#allocation4], %s2019
        %s2021 = sand.u32 %s171, 1
        %s2022 = smul.addr %s2021, 8
        %s2023 = scalar_lea.vmem [#allocation11], %s2022
        // Predicated region
        $region65: #{tpu_custom_call.1} parent=43 // pred_check
          %p2024 = pneg %p181
        $region66: #{tpu_custom_call.1} parent=43 // pred_check_branch
          %2026 = sbr.rel (%p2024) target = $region68
        $region67: #{tpu_custom_call.1} parent=43 // pred_region
          %s2028 = ssub.s32 128, 128
          %2029 = vsyncadd %s2020, %s2028
          %s2030 = smul.addr %s27, 128
          %s2031 = scalar_lea.hbm %s6, %s2030
          %s2033 = sshll.u32 %s2023, 4
          %s2034 = int_to_ptr.vmem [resolvable:$true] %s2033
          %2036 = dma.vmem_to_hbm [thread:$0]  %s2034, 128, %s2031, %s2020
        $region68: #{tpu_custom_call.1} parent=43 // pred_fallthru
          _
      $region44: #{tpu_custom_call.1} parent=5 // pred_fallthru
        _
      %p2037 = scmp.le.s32.totalorder 2, %s22
      // Predicated region
      $region69: #{tpu_custom_call.1} parent=5 // pred_check
        %p2038 = pneg %p2037
      $region70: #{tpu_custom_call.1} parent=5 // pred_check_branch
        %2040 = sbr.rel (%p2038) target = $region72
      $region71: #{tpu_custom_call.1} parent=5 // pred_region
        %s2041 = ssub.s32 %s22, 2
        // Predicated region
        $region73: #{tpu_custom_call.1} parent=71 // pred_check
          %p2042 = pneg %p187
        $region74: #{tpu_custom_call.1} parent=71 // pred_check_branch
          %2044 = sbr.rel (%p2042) target = $region76
        $region75: #{tpu_custom_call.1} parent=71 // pred_region
          %s2045 = sand.u32 %s172, 1
          %s2046 = scalar_lea.sflag [#allocation4], %s2045
          %s2047 = sand.u32 %s172, 1
          %s2048 = smul.addr %s2047, 8
          %s2049 = scalar_lea.vmem [#allocation11], %s2048
          %2050 = dma.done %s2046, 128
        $region76: #{tpu_custom_call.1} parent=71 // pred_fallthru
          _
      $region72: #{tpu_custom_call.1} parent=5 // pred_fallthru
        _
    $region6: #{tpu_custom_call.1} parent=1 // loop_footer
      %s26 = sadd.s32 1, %s22
    $region7: #{tpu_custom_call.1} parent=1 // loop_footer_branch
      %21 = sbr.rel target = $region3
    $region8: #{tpu_custom_call.1} parent=1 // loop_exit
      _
    %2051 = vsyncpa [#allocation3], 1
    %s2052 = scalar_lea.sflag [#allocation3], 1
    %2053 = vsyncpa %s2052, 1
    %2054 = vsyncpa [#allocation6], 1
    %s2055 = scalar_lea.sflag [#allocation6], 1
    %2056 = vsyncpa %s2055, 1
    %2057 = vsyncpa [#allocation9], 1
    %2058 = vsyncpa [#allocation4], 1
    %s2059 = scalar_lea.sflag [#allocation4], 1
    %2060 = vsyncpa %s2059, 1

</llo_original>
